<compile_context>
chip_gen: v5e
topology: v5e:2x2
jax: 0.10.0
libtpu: 0.0.40
codegen_flags: <defaults>
</compile_context>

<pallas_src>
import functools

import jax
import jax.numpy as jnp
from jax.experimental import pallas as pl
from jax.experimental.pallas import tpu as pltpu

EPS = 1e-5


# ----------------------- in-kernel compute helpers --------------------------
def _channel_sum_bcast(v, num_w, c):
    """v: (1, num_w*c).  Returns (1, num_w*c) where every lane (w, ch) holds the
    sum over all w positions of channel ch.  Circular roll-tree over the W lane
    groups (XLU slot); the wrap-around also broadcasts the result to every w,
    so no reshape / tile / relayout is needed.  Requires num_w power of two."""
    k = num_w
    while k > 1:
        k //= 2
        v = v + pltpu.roll(v, shift=k * c, axis=1)
    return v


def _bn_relu_lanes(x, gamma_t, beta_t, num_w, c, inv_count):
    """Training-mode BatchNorm2d (batch stats, biased var, eps=1e-5) + ReLU on a
    lane-merged (rows, num_w*c) f32 slab.  gamma_t/beta_t are the per-channel
    affine params tiled over the w positions, shape (1, num_w*c).  One-pass
    statistics: var = E[x^2] - mean^2 (fine at these scales; use a two-pass /
    Welford combine when tiled for real shapes)."""
    s = _channel_sum_bcast(jnp.sum(x, axis=0, keepdims=True), num_w, c)
    ss = _channel_sum_bcast(jnp.sum(x * x, axis=0, keepdims=True), num_w, c)
    mean = s * inv_count
    var = ss * inv_count - mean * mean
    scale = gamma_t * jax.lax.rsqrt(var + EPS)
    shift = beta_t - mean * scale
    return jnp.maximum(x * scale + shift, 0.0)


# --------------------------------- kernel ------------------------------------
def _bottleneck_kernel(x_ref, g1_ref, b1_ref, w1_ref, g2_ref, b2_ref, w2_ref,
                       g3_ref, b3_ref, w3_ref, o_ref, xpad_ref,
                       *, n, h, w, cin, cmid):
    rows = n * h
    l_mid = w * cmid
    inv_count = 1.0 / float(n * h * w)

    x = x_ref[...]                        # (N*H, W*Cin) f32, lane-dense
    residual = x                          # downsample is None, Cout == Cin

    # --- bn1 + relu, conv1 (1x1) as block-diagonal lane-merged matmul ---
    a1 = _bn_relu_lanes(x, g1_ref[...], b1_ref[...], w, cin, inv_count)
    y1 = jnp.dot(a1.astype(jnp.bfloat16), w1_ref[...],
                 preferred_element_type=jnp.float32)          # (N*H, W*Cmid)

    # --- bn2 + relu ---
    a2 = _bn_relu_lanes(y1, g2_ref[...], b2_ref[...], w, cmid, inv_count)

    # --- conv2 (3x3, stride 1, pad 1) ---
    # Vertical halo via bf16 scratch: zero only the 2 halo rows per image and
    # write the interior once.  Horizontal taps (and W-edge zero padding) are
    # folded into the banded weight matrices, so each ky tap is a lane-dense
    # (N*H, W*Cmid) slab and conv2 is 3 accumulated bf16 matmuls (f32 acc).
    a2b = a2.astype(jnp.bfloat16).reshape(n, h, l_mid)
    zero_row = jnp.zeros((n, 1, l_mid), jnp.bfloat16)
    xpad_ref[:, 0:1, :] = zero_row
    xpad_ref[:, h + 1:h + 2, :] = zero_row
    xpad_ref[:, 1:h + 1, :] = a2b
    y2 = jnp.zeros((rows, l_mid), jnp.float32)
    for ky in range(3):                                       # static unroll
        tap = xpad_ref[:, ky:ky + h, :].reshape(rows, l_mid)  # bf16
        y2 = y2 + jnp.dot(tap, w2_ref[ky],
                          preferred_element_type=jnp.float32)

    # --- bn3 + relu, conv3 (1x1), residual add (all lane-dense) ---
    a3 = _bn_relu_lanes(y2, g3_ref[...], b3_ref[...], w, cmid, inv_count)
    y3 = jnp.dot(a3.astype(jnp.bfloat16), w3_ref[...],
                 preferred_element_type=jnp.float32)          # (N*H, W*Cout)
    o_ref[...] = y3 + residual


# ------------------------------ weight repack --------------------------------
def _repack_weights(params, w):
    """Build the lane-merged matmul weights.  In a real model this is a
    one-time parameter repack at init, not per-forward work."""
    cin, cmid = params["w1"].shape
    cout = params["w3"].shape[-1]
    eye_w = jnp.eye(w, dtype=jnp.float32)
    w1 = params["w1"].astype(jnp.float32)
    w2 = params["w2"].astype(jnp.float32)          # (9, cmid, cmid), t = ky*3+kx
    w3 = params["w3"].astype(jnp.float32)

    # Block diagonal: bd[(w, ci), (w, co)] = w1[ci, co].
    bd1 = jnp.einsum("io,wv->wivo", w1, eye_w).reshape(w * cin, w * cmid)
    bd3 = jnp.einsum("io,wv->wivo", w3, eye_w).reshape(w * cmid, w * cout)

    # Banded per-ky matrices: bd2[ky][(win, ci), (wout, co)] = w2[ky*3+kx, ci, co]
    # with win = wout + kx - 1; out-of-range entries stay zero, which realises
    # the horizontal zero padding without any padded lanes.
    bd2 = []
    for ky in range(3):
        m = jnp.zeros((w, cmid, w, cmid), jnp.float32)
        for kx in range(3):
            sel = jnp.eye(w, k=1 - kx, dtype=jnp.float32)     # sel[win,wout]
            m = m + jnp.einsum("io,wv->wivo", w2[ky * 3 + kx], sel)
        bd2.append(m.reshape(w * cmid, w * cmid))
    bd2 = jnp.stack(bd2)

    return (bd1.astype(jnp.bfloat16), bd2.astype(jnp.bfloat16),
            bd3.astype(jnp.bfloat16))


def _tile_bn(p, w):
    """(1, C) channel param -> (1, W*C) lane-merged param (lane = w*C + c)."""
    return jnp.tile(jnp.asarray(p, jnp.float32).reshape(1, -1), (1, w))


# -------------------------------- wrappers -----------------------------------
def bottleneck_v2_nhwc(x_nhwc, params):
    """NHWC entry point.  x_nhwc: (N, H, W, inplanes).  All reshapes here are
    contiguous views (no transposes / relayouts on the hot path)."""
    x = x_nhwc.astype(jnp.float32)
    n, h, w, cin = x.shape
    cmid = params["w1"].shape[-1]
    cout = params["w3"].shape[-1]
    assert cin == cout, "identity residual requires inplanes == 4*planes"
    assert w > 0 and (w & (w - 1)) == 0, "roll-tree BN reduce needs power-of-2 W"

    bd1, bd2, bd3 = _repack_weights(params, w)
    g1t, b1t = _tile_bn(params["g1"], w), _tile_bn(params["b1"], w)
    g2t, b2t = _tile_bn(params["g2"], w), _tile_bn(params["b2"], w)
    g3t, b3t = _tile_bn(params["g3"], w), _tile_bn(params["b3"], w)

    x2d = x.reshape(n * h, w * cin)                 # lane-dense input slab

    kernel = functools.partial(_bottleneck_kernel,
                               n=n, h=h, w=w, cin=cin, cmid=cmid)
    out = pl.pallas_call(
        kernel,
        out_shape=jax.ShapeDtypeStruct((n * h, w * cout), jnp.float32),
        in_specs=[pl.BlockSpec(memory_space=pltpu.MemorySpace.VMEM)] * 10,
        out_specs=pl.BlockSpec(memory_space=pltpu.MemorySpace.VMEM),
        scratch_shapes=[pltpu.VMEM((n, h + 2, w * cmid), jnp.bfloat16)],
    )(x2d, g1t, b1t, bd1, g2t, b2t, bd2, g3t, b3t, bd3)
    return out.reshape(n, h, w, cout)


def bottleneck_v2(x_nchw, params):
    """PyTorch-layout convenience wrapper (NCHW in / NCHW out).  Prefer the
    NHWC entry point: these transposes are whole-tensor HBM round trips."""
    y = bottleneck_v2_nhwc(jnp.transpose(x_nchw, (0, 2, 3, 1)), params)
    return jnp.transpose(y, (0, 3, 1, 2))


# ------------------------- pure-JAX reference (check) ------------------------
def bottleneck_v2_ref_nhwc(x_nhwc, params):
    """Straightforward NHWC reference mirroring the kernel's numerics (bf16
    MXU operands, f32 accumulation, training-mode BN with biased variance)."""
    x = x_nhwc.astype(jnp.float32)
    n, h, w, cin = x.shape
    cmid = params["w1"].shape[-1]
    r = n * h * w
    w1 = params["w1"].astype(jnp.bfloat16)
    w2 = params["w2"].reshape(9 * cmid, cmid).astype(jnp.bfloat16)
    w3 = params["w3"].astype(jnp.bfloat16)

    def bn_relu(z, g, b):
        zr = z.reshape(-1, z.shape[-1])
        mean = jnp.mean(zr, axis=0, keepdims=True)
        var = jnp.mean(zr * zr, axis=0, keepdims=True) - mean * mean
        s = g * jax.lax.rsqrt(var + EPS)
        return jnp.maximum(zr * s + (b - mean * s), 0.0).reshape(z.shape)

    a1 = bn_relu(x, params["g1"], params["b1"])
    y1 = jnp.dot(a1.reshape(r, cin).astype(jnp.bfloat16), w1,
                 preferred_element_type=jnp.float32).reshape(n, h, w, cmid)
    a2 = bn_relu(y1, params["g2"], params["b2"])
    xp = jnp.pad(a2, ((0, 0), (1, 1), (1, 1), (0, 0)))
    taps = [xp[:, ky:ky + h, kx:kx + w, :] for ky in range(3) for kx in range(3)]
    slab = jnp.concatenate(taps, axis=-1).reshape(r, 9 * cmid)
    y2 = jnp.dot(slab.astype(jnp.bfloat16), w2,
                 preferred_element_type=jnp.float32).reshape(n, h, w, cmid)
    a3 = bn_relu(y2, params["g3"], params["b3"])
    y3 = jnp.dot(a3.reshape(r, cmid).astype(jnp.bfloat16), w3,
                 preferred_element_type=jnp.float32).reshape(n, h, w, -1)
    return y3 + x


if __name__ == "__main__":
    planes = 8
    inplanes = 4 * planes          # identity-residual configuration
    N, H, W = 2, 16, 16

    key = jax.random.PRNGKey(0)
    ks = jax.random.split(key, 10)

    # PyTorch-style NCHW input; converted to NHWC once, outside the kernel path.
    x_nchw = jax.random.normal(ks[0], (N, inplanes, H, W), jnp.float32)
    x_nhwc = jnp.transpose(x_nchw, (0, 2, 3, 1))

    params = {
        # conv weights (kaiming-like scale) in matmul-friendly layouts
        "w1": jax.random.normal(ks[1], (inplanes, planes), jnp.float32)
              * (2.0 / inplanes) ** 0.5,                       # 1x1: Cin x Cout
        "w2": jax.random.normal(ks[2], (9, planes, planes), jnp.float32)
              * (2.0 / (9 * planes)) ** 0.5,                   # 3x3 taps (ky*3+kx)
        "w3": jax.random.normal(ks[3], (planes, 4 * planes), jnp.float32)
              * (2.0 / planes) ** 0.5,                         # 1x1: Cin x Cout
        # BN affine params (gamma~1, beta~0 with a small perturbation so the
        # affine path is exercised)
        "g1": 1.0 + 0.1 * jax.random.normal(ks[4], (1, inplanes), jnp.float32),
        "b1": 0.1 * jax.random.normal(ks[5], (1, inplanes), jnp.float32),
        "g2": 1.0 + 0.1 * jax.random.normal(ks[6], (1, planes), jnp.float32),
        "b2": 0.1 * jax.random.normal(ks[7], (1, planes), jnp.float32),
        "g3": 1.0 + 0.1 * jax.random.normal(ks[8], (1, planes), jnp.float32),
        "b3": 0.1 * jax.random.normal(ks[9], (1, planes), jnp.float32),
    }

    out = jax.block_until_ready(jax.jit(bottleneck_v2_nhwc)(x_nhwc, params))
    ref = jax.block_until_ready(bottleneck_v2_ref_nhwc(x_nhwc, params))

    assert out.shape == (N, H, W, 4 * planes), out.shape
    assert bool(jnp.all(jnp.isfinite(out)))
    max_err = float(jnp.max(jnp.abs(out - ref)))
    assert bool(jnp.allclose(out, ref, atol=1e-2, rtol=1e-2)), max_err

    print("KERNEL_OK")
</pallas_src>

<mosaic_0001>
module attributes {stable_mosaic.version = 11 : i64} {
  func.func @_bottleneck_kernel(%arg0: memref<32x512xf32, #tpu.memory_space<vmem>>, %arg1: memref<1x512xf32, #tpu.memory_space<vmem>>, %arg2: memref<1x512xf32, #tpu.memory_space<vmem>>, %arg3: memref<512x128xbf16, #tpu.memory_space<vmem>>, %arg4: memref<1x128xf32, #tpu.memory_space<vmem>>, %arg5: memref<1x128xf32, #tpu.memory_space<vmem>>, %arg6: memref<3x128x128xbf16, #tpu.memory_space<vmem>>, %arg7: memref<1x128xf32, #tpu.memory_space<vmem>>, %arg8: memref<1x128xf32, #tpu.memory_space<vmem>>, %arg9: memref<128x512xbf16, #tpu.memory_space<vmem>>, %arg10: memref<32x512xf32, #tpu.memory_space<vmem>>, %arg11: memref<2x18x128xbf16, #tpu.memory_space<vmem>>) attributes {dimension_semantics = [], scalar_prefetch = 0 : i64, scratch_operands = 1 : i64, tpu.core_type = #tpu.core_type<tc>} {
    %c0 = arith.constant 0 : index
    %c0_0 = arith.constant 0 : index
    %0 = vector.load %arg0[%c0, %c0_0] : memref<32x512xf32, #tpu.memory_space<vmem>>, vector<32x512xf32>
    %c0_1 = arith.constant 0 : index
    %c0_2 = arith.constant 0 : index
    %1 = vector.load %arg1[%c0_1, %c0_2] : memref<1x512xf32, #tpu.memory_space<vmem>>, vector<1x512xf32>
    %c0_3 = arith.constant 0 : index
    %c0_4 = arith.constant 0 : index
    %2 = vector.load %arg2[%c0_3, %c0_4] : memref<1x512xf32, #tpu.memory_space<vmem>>, vector<1x512xf32>
    %cst = arith.constant dense<0.000000e+00> : vector<512xf32>
    %3 = vector.multi_reduction <add>, %0, %cst [0] : vector<32x512xf32> to vector<512xf32>
    %4 = vector.shape_cast %3 : vector<512xf32> to vector<1x512xf32>
    %c256_i32 = arith.constant 256 : i32
    %5 = tpu.dynamic_rotate %4 by %c256_i32 dim 1 : vector<1x512xf32>, i32 -> vector<1x512xf32>
    %6 = arith.addf %4, %5 : vector<1x512xf32>
    %c128_i32 = arith.constant 128 : i32
    %7 = tpu.dynamic_rotate %6 by %c128_i32 dim 1 : vector<1x512xf32>, i32 -> vector<1x512xf32>
    %8 = arith.addf %6, %7 : vector<1x512xf32>
    %c64_i32 = arith.constant 64 : i32
    %9 = tpu.dynamic_rotate %8 by %c64_i32 dim 1 : vector<1x512xf32>, i32 -> vector<1x512xf32>
    %10 = arith.addf %8, %9 : vector<1x512xf32>
    %c32_i32 = arith.constant 32 : i32
    %11 = tpu.dynamic_rotate %10 by %c32_i32 dim 1 : vector<1x512xf32>, i32 -> vector<1x512xf32>
    %12 = arith.addf %10, %11 : vector<1x512xf32>
    %13 = arith.mulf %0, %0 : vector<32x512xf32>
    %cst_5 = arith.constant dense<0.000000e+00> : vector<512xf32>
    %14 = vector.multi_reduction <add>, %13, %cst_5 [0] : vector<32x512xf32> to vector<512xf32>
    %15 = vector.shape_cast %14 : vector<512xf32> to vector<1x512xf32>
    %c256_i32_6 = arith.constant 256 : i32
    %16 = tpu.dynamic_rotate %15 by %c256_i32_6 dim 1 : vector<1x512xf32>, i32 -> vector<1x512xf32>
    %17 = arith.addf %15, %16 : vector<1x512xf32>
    %c128_i32_7 = arith.constant 128 : i32
    %18 = tpu.dynamic_rotate %17 by %c128_i32_7 dim 1 : vector<1x512xf32>, i32 -> vector<1x512xf32>
    %19 = arith.addf %17, %18 : vector<1x512xf32>
    %c64_i32_8 = arith.constant 64 : i32
    %20 = tpu.dynamic_rotate %19 by %c64_i32_8 dim 1 : vector<1x512xf32>, i32 -> vector<1x512xf32>
    %21 = arith.addf %19, %20 : vector<1x512xf32>
    %c32_i32_9 = arith.constant 32 : i32
    %22 = tpu.dynamic_rotate %21 by %c32_i32_9 dim 1 : vector<1x512xf32>, i32 -> vector<1x512xf32>
    %23 = arith.addf %21, %22 : vector<1x512xf32>
    %cst_10 = arith.constant 0.001953125 : f32
    %24 = vector.broadcast %cst_10 : f32 to vector<1x512xf32>
    %25 = arith.mulf %12, %24 : vector<1x512xf32>
    %cst_11 = arith.constant 0.001953125 : f32
    %26 = vector.broadcast %cst_11 : f32 to vector<1x512xf32>
    %27 = arith.mulf %23, %26 : vector<1x512xf32>
    %28 = arith.mulf %25, %25 : vector<1x512xf32>
    %29 = arith.subf %27, %28 : vector<1x512xf32>
    %cst_12 = arith.constant 9.99999974E-6 : f32
    %30 = vector.broadcast %cst_12 : f32 to vector<1x512xf32>
    %31 = arith.addf %29, %30 : vector<1x512xf32>
    %32 = math.rsqrt %31 : vector<1x512xf32>
    %33 = arith.mulf %1, %32 : vector<1x512xf32>
    %34 = arith.mulf %25, %33 : vector<1x512xf32>
    %35 = arith.subf %2, %34 : vector<1x512xf32>
    %36 = vector.broadcast %33 : vector<1x512xf32> to vector<32x512xf32>
    %37 = arith.mulf %0, %36 : vector<32x512xf32>
    %38 = vector.broadcast %35 : vector<1x512xf32> to vector<32x512xf32>
    %39 = arith.addf %37, %38 : vector<32x512xf32>
    %cst_13 = arith.constant 0.000000e+00 : f32
    %40 = vector.broadcast %cst_13 : f32 to vector<32x512xf32>
    %41 = arith.maximumf %39, %40 : vector<32x512xf32>
    %42 = arith.truncf %41 : vector<32x512xf32> to vector<32x512xbf16>
    %c0_14 = arith.constant 0 : index
    %c0_15 = arith.constant 0 : index
    %43 = vector.load %arg3[%c0_14, %c0_15] : memref<512x128xbf16, #tpu.memory_space<vmem>>, vector<512x128xbf16>
    %cst_16 = arith.constant dense<0.000000e+00> : vector<32x128xf32>
    %44 = tpu.matmul %42, %43, %cst_16 {dimension_numbers = #tpu.dot_dimension_numbers<[1], [0], [0], [1], [0, 0, 1, 1], [], []>} : vector<32x512xbf16>, vector<512x128xbf16>, vector<32x128xf32> -> vector<32x128xf32>
    %c0_17 = arith.constant 0 : index
    %c0_18 = arith.constant 0 : index
    %45 = vector.load %arg4[%c0_17, %c0_18] : memref<1x128xf32, #tpu.memory_space<vmem>>, vector<1x128xf32>
    %c0_19 = arith.constant 0 : index
    %c0_20 = arith.constant 0 : index
    %46 = vector.load %arg5[%c0_19, %c0_20] : memref<1x128xf32, #tpu.memory_space<vmem>>, vector<1x128xf32>
    %cst_21 = arith.constant dense<0.000000e+00> : vector<128xf32>
    %47 = vector.multi_reduction <add>, %44, %cst_21 [0] : vector<32x128xf32> to vector<128xf32>
    %48 = vector.shape_cast %47 : vector<128xf32> to vector<1x128xf32>
    %c64_i32_22 = arith.constant 64 : i32
    %49 = tpu.dynamic_rotate %48 by %c64_i32_22 dim 1 : vector<1x128xf32>, i32 -> vector<1x128xf32>
    %50 = arith.addf %48, %49 : vector<1x128xf32>
    %c32_i32_23 = arith.constant 32 : i32
    %51 = tpu.dynamic_rotate %50 by %c32_i32_23 dim 1 : vector<1x128xf32>, i32 -> vector<1x128xf32>
    %52 = arith.addf %50, %51 : vector<1x128xf32>
    %c16_i32 = arith.constant 16 : i32
    %53 = tpu.dynamic_rotate %52 by %c16_i32 dim 1 : vector<1x128xf32>, i32 -> vector<1x128xf32>
    %54 = arith.addf %52, %53 : vector<1x128xf32>
    %c8_i32 = arith.constant 8 : i32
    %55 = tpu.dynamic_rotate %54 by %c8_i32 dim 1 : vector<1x128xf32>, i32 -> vector<1x128xf32>
    %56 = arith.addf %54, %55 : vector<1x128xf32>
    %57 = arith.mulf %44, %44 : vector<32x128xf32>
    %cst_24 = arith.constant dense<0.000000e+00> : vector<128xf32>
    %58 = vector.multi_reduction <add>, %57, %cst_24 [0] : vector<32x128xf32> to vector<128xf32>
    %59 = vector.shape_cast %58 : vector<128xf32> to vector<1x128xf32>
    %c64_i32_25 = arith.constant 64 : i32
    %60 = tpu.dynamic_rotate %59 by %c64_i32_25 dim 1 : vector<1x128xf32>, i32 -> vector<1x128xf32>
    %61 = arith.addf %59, %60 : vector<1x128xf32>
    %c32_i32_26 = arith.constant 32 : i32
    %62 = tpu.dynamic_rotate %61 by %c32_i32_26 dim 1 : vector<1x128xf32>, i32 -> vector<1x128xf32>
    %63 = arith.addf %61, %62 : vector<1x128xf32>
    %c16_i32_27 = arith.constant 16 : i32
    %64 = tpu.dynamic_rotate %63 by %c16_i32_27 dim 1 : vector<1x128xf32>, i32 -> vector<1x128xf32>
    %65 = arith.addf %63, %64 : vector<1x128xf32>
    %c8_i32_28 = arith.constant 8 : i32
    %66 = tpu.dynamic_rotate %65 by %c8_i32_28 dim 1 : vector<1x128xf32>, i32 -> vector<1x128xf32>
    %67 = arith.addf %65, %66 : vector<1x128xf32>
    %cst_29 = arith.constant 0.001953125 : f32
    %68 = vector.broadcast %cst_29 : f32 to vector<1x128xf32>
    %69 = arith.mulf %56, %68 : vector<1x128xf32>
    %cst_30 = arith.constant 0.001953125 : f32
    %70 = vector.broadcast %cst_30 : f32 to vector<1x128xf32>
    %71 = arith.mulf %67, %70 : vector<1x128xf32>
    %72 = arith.mulf %69, %69 : vector<1x128xf32>
    %73 = arith.subf %71, %72 : vector<1x128xf32>
    %cst_31 = arith.constant 9.99999974E-6 : f32
    %74 = vector.broadcast %cst_31 : f32 to vector<1x128xf32>
    %75 = arith.addf %73, %74 : vector<1x128xf32>
    %76 = math.rsqrt %75 : vector<1x128xf32>
    %77 = arith.mulf %45, %76 : vector<1x128xf32>
    %78 = arith.mulf %69, %77 : vector<1x128xf32>
    %79 = arith.subf %46, %78 : vector<1x128xf32>
    %80 = vector.broadcast %77 : vector<1x128xf32> to vector<32x128xf32>
    %81 = arith.mulf %44, %80 : vector<32x128xf32>
    %82 = vector.broadcast %79 : vector<1x128xf32> to vector<32x128xf32>
    %83 = arith.addf %81, %82 : vector<32x128xf32>
    %cst_32 = arith.constant 0.000000e+00 : f32
    %84 = vector.broadcast %cst_32 : f32 to vector<32x128xf32>
    %85 = arith.maximumf %83, %84 : vector<32x128xf32>
    %86 = arith.truncf %85 : vector<32x128xf32> to vector<32x128xbf16>
    %87 = vector.shape_cast %86 : vector<32x128xbf16> to vector<2x16x128xbf16>
    %cst_33 = arith.constant 0.000000e+00 : bf16
    %88 = vector.broadcast %cst_33 : bf16 to vector<2x1x128xbf16>
    %c0_34 = arith.constant 0 : index
    %c0_35 = arith.constant 0 : index
    %c0_36 = arith.constant 0 : index
    %89 = vector.load %arg11[%c0_34, %c0_35, %c0_36] : memref<2x18x128xbf16, #tpu.memory_space<vmem>>, vector<2x1x128xbf16>
    tpu.vector_store %arg11[%c0_34, %c0_35, %c0_36], %88 {strides = array<i32>} : memref<2x18x128xbf16, #tpu.memory_space<vmem>>, vector<2x1x128xbf16>,
    %c0_37 = arith.constant 0 : index
    %c17 = arith.constant 17 : index
    %c0_38 = arith.constant 0 : index
    %90 = vector.load %arg11[%c0_37, %c17, %c0_38] : memref<2x18x128xbf16, #tpu.memory_space<vmem>>, vector<2x1x128xbf16>
    tpu.vector_store %arg11[%c0_37, %c17, %c0_38], %88 {strides = array<i32>} : memref<2x18x128xbf16, #tpu.memory_space<vmem>>, vector<2x1x128xbf16>,
    %c0_39 = arith.constant 0 : index
    %c1 = arith.constant 1 : index
    %c0_40 = arith.constant 0 : index
    %91 = vector.load %arg11[%c0_39, %c1, %c0_40] : memref<2x18x128xbf16, #tpu.memory_space<vmem>>, vector<2x16x128xbf16>
    tpu.vector_store %arg11[%c0_39, %c1, %c0_40], %87 {strides = array<i32>} : memref<2x18x128xbf16, #tpu.memory_space<vmem>>, vector<2x16x128xbf16>,
    %cst_41 = arith.constant 0.000000e+00 : f32
    %92 = vector.broadcast %cst_41 : f32 to vector<32x128xf32>
    %c0_42 = arith.constant 0 : index
    %c0_43 = arith.constant 0 : index
    %c0_44 = arith.constant 0 : index
    %93 = vector.load %arg11[%c0_42, %c0_43, %c0_44] : memref<2x18x128xbf16, #tpu.memory_space<vmem>>, vector<2x16x128xbf16>
    %94 = vector.shape_cast %93 : vector<2x16x128xbf16> to vector<32x128xbf16>
    %c0_45 = arith.constant 0 : index
    %c0_46 = arith.constant 0 : index
    %c0_47 = arith.constant 0 : index
    %95 = vector.load %arg6[%c0_45, %c0_46, %c0_47] : memref<3x128x128xbf16, #tpu.memory_space<vmem>>, vector<1x128x128xbf16>
    %96 = vector.shape_cast %95 : vector<1x128x128xbf16> to vector<128x128xbf16>
    %cst_48 = arith.constant dense<0.000000e+00> : vector<32x128xf32>
    %97 = tpu.matmul %94, %96, %cst_48 {dimension_numbers = #tpu.dot_dimension_numbers<[1], [0], [0], [1], [0, 0, 1, 1], [], []>} : vector<32x128xbf16>, vector<128x128xbf16>, vector<32x128xf32> -> vector<32x128xf32>
    %98 = arith.addf %92, %97 : vector<32x128xf32>
    %c0_49 = arith.constant 0 : index
    %c1_50 = arith.constant 1 : index
    %c0_51 = arith.constant 0 : index
    %99 = vector.load %arg11[%c0_49, %c1_50, %c0_51] : memref<2x18x128xbf16, #tpu.memory_space<vmem>>, vector<2x16x128xbf16>
    %100 = vector.shape_cast %99 : vector<2x16x128xbf16> to vector<32x128xbf16>
    %c1_52 = arith.constant 1 : index
    %c0_53 = arith.constant 0 : index
    %c0_54 = arith.constant 0 : index
    %101 = vector.load %arg6[%c1_52, %c0_53, %c0_54] : memref<3x128x128xbf16, #tpu.memory_space<vmem>>, vector<1x128x128xbf16>
    %102 = vector.shape_cast %101 : vector<1x128x128xbf16> to vector<128x128xbf16>
    %cst_55 = arith.constant dense<0.000000e+00> : vector<32x128xf32>
    %103 = tpu.matmul %100, %102, %cst_55 {dimension_numbers = #tpu.dot_dimension_numbers<[1], [0], [0], [1], [0, 0, 1, 1], [], []>} : vector<32x128xbf16>, vector<128x128xbf16>, vector<32x128xf32> -> vector<32x128xf32>
    %104 = arith.addf %98, %103 : vector<32x128xf32>
    %c0_56 = arith.constant 0 : index
    %c2 = arith.constant 2 : index
    %c0_57 = arith.constant 0 : index
    %105 = vector.load %arg11[%c0_56, %c2, %c0_57] : memref<2x18x128xbf16, #tpu.memory_space<vmem>>, vector<2x16x128xbf16>
    %106 = vector.shape_cast %105 : vector<2x16x128xbf16> to vector<32x128xbf16>
    %c2_58 = arith.constant 2 : index
    %c0_59 = arith.constant 0 : index
    %c0_60 = arith.constant 0 : index
    %107 = vector.load %arg6[%c2_58, %c0_59, %c0_60] : memref<3x128x128xbf16, #tpu.memory_space<vmem>>, vector<1x128x128xbf16>
    %108 = vector.shape_cast %107 : vector<1x128x128xbf16> to vector<128x128xbf16>
    %cst_61 = arith.constant dense<0.000000e+00> : vector<32x128xf32>
    %109 = tpu.matmul %106, %108, %cst_61 {dimension_numbers = #tpu.dot_dimension_numbers<[1], [0], [0], [1], [0, 0, 1, 1], [], []>} : vector<32x128xbf16>, vector<128x128xbf16>, vector<32x128xf32> -> vector<32x128xf32>
    %110 = arith.addf %104, %109 : vector<32x128xf32>
    %c0_62 = arith.constant 0 : index
    %c0_63 = arith.constant 0 : index
    %111 = vector.load %arg7[%c0_62, %c0_63] : memref<1x128xf32, #tpu.memory_space<vmem>>, vector<1x128xf32>
    %c0_64 = arith.constant 0 : index
    %c0_65 = arith.constant 0 : index
    %112 = vector.load %arg8[%c0_64, %c0_65] : memref<1x128xf32, #tpu.memory_space<vmem>>, vector<1x128xf32>
    %cst_66 = arith.constant dense<0.000000e+00> : vector<128xf32>
    %113 = vector.multi_reduction <add>, %110, %cst_66 [0] : vector<32x128xf32> to vector<128xf32>
    %114 = vector.shape_cast %113 : vector<128xf32> to vector<1x128xf32>
    %c64_i32_67 = arith.constant 64 : i32
    %115 = tpu.dynamic_rotate %114 by %c64_i32_67 dim 1 : vector<1x128xf32>, i32 -> vector<1x128xf32>
    %116 = arith.addf %114, %115 : vector<1x128xf32>
    %c32_i32_68 = arith.constant 32 : i32
    %117 = tpu.dynamic_rotate %116 by %c32_i32_68 dim 1 : vector<1x128xf32>, i32 -> vector<1x128xf32>
    %118 = arith.addf %116, %117 : vector<1x128xf32>
    %c16_i32_69 = arith.constant 16 : i32
    %119 = tpu.dynamic_rotate %118 by %c16_i32_69 dim 1 : vector<1x128xf32>, i32 -> vector<1x128xf32>
    %120 = arith.addf %118, %119 : vector<1x128xf32>
    %c8_i32_70 = arith.constant 8 : i32
    %121 = tpu.dynamic_rotate %120 by %c8_i32_70 dim 1 : vector<1x128xf32>, i32 -> vector<1x128xf32>
    %122 = arith.addf %120, %121 : vector<1x128xf32>
    %123 = arith.mulf %110, %110 : vector<32x128xf32>
    %cst_71 = arith.constant dense<0.000000e+00> : vector<128xf32>
    %124 = vector.multi_reduction <add>, %123, %cst_71 [0] : vector<32x128xf32> to vector<128xf32>
    %125 = vector.shape_cast %124 : vector<128xf32> to vector<1x128xf32>
    %c64_i32_72 = arith.constant 64 : i32
    %126 = tpu.dynamic_rotate %125 by %c64_i32_72 dim 1 : vector<1x128xf32>, i32 -> vector<1x128xf32>
    %127 = arith.addf %125, %126 : vector<1x128xf32>
    %c32_i32_73 = arith.constant 32 : i32
    %128 = tpu.dynamic_rotate %127 by %c32_i32_73 dim 1 : vector<1x128xf32>, i32 -> vector<1x128xf32>
    %129 = arith.addf %127, %128 : vector<1x128xf32>
    %c16_i32_74 = arith.constant 16 : i32
    %130 = tpu.dynamic_rotate %129 by %c16_i32_74 dim 1 : vector<1x128xf32>, i32 -> vector<1x128xf32>
    %131 = arith.addf %129, %130 : vector<1x128xf32>
    %c8_i32_75 = arith.constant 8 : i32
    %132 = tpu.dynamic_rotate %131 by %c8_i32_75 dim 1 : vector<1x128xf32>, i32 -> vector<1x128xf32>
    %133 = arith.addf %131, %132 : vector<1x128xf32>
    %cst_76 = arith.constant 0.001953125 : f32
    %134 = vector.broadcast %cst_76 : f32 to vector<1x128xf32>
    %135 = arith.mulf %122, %134 : vector<1x128xf32>
    %cst_77 = arith.constant 0.001953125 : f32
    %136 = vector.broadcast %cst_77 : f32 to vector<1x128xf32>
    %137 = arith.mulf %133, %136 : vector<1x128xf32>
    %138 = arith.mulf %135, %135 : vector<1x128xf32>
    %139 = arith.subf %137, %138 : vector<1x128xf32>
    %cst_78 = arith.constant 9.99999974E-6 : f32
    %140 = vector.broadcast %cst_78 : f32 to vector<1x128xf32>
    %141 = arith.addf %139, %140 : vector<1x128xf32>
    %142 = math.rsqrt %141 : vector<1x128xf32>
    %143 = arith.mulf %111, %142 : vector<1x128xf32>
    %144 = arith.mulf %135, %143 : vector<1x128xf32>
    %145 = arith.subf %112, %144 : vector<1x128xf32>
    %146 = vector.broadcast %143 : vector<1x128xf32> to vector<32x128xf32>
    %147 = arith.mulf %110, %146 : vector<32x128xf32>
    %148 = vector.broadcast %145 : vector<1x128xf32> to vector<32x128xf32>
    %149 = arith.addf %147, %148 : vector<32x128xf32>
    %cst_79 = arith.constant 0.000000e+00 : f32
    %150 = vector.broadcast %cst_79 : f32 to vector<32x128xf32>
    %151 = arith.maximumf %149, %150 : vector<32x128xf32>
    %152 = arith.truncf %151 : vector<32x128xf32> to vector<32x128xbf16>
    %c0_80 = arith.constant 0 : index
    %c0_81 = arith.constant 0 : index
    %153 = vector.load %arg9[%c0_80, %c0_81] : memref<128x512xbf16, #tpu.memory_space<vmem>>, vector<128x512xbf16>
    %cst_82 = arith.constant dense<0.000000e+00> : vector<32x512xf32>
    %154 = tpu.matmul %152, %153, %cst_82 {dimension_numbers = #tpu.dot_dimension_numbers<[1], [0], [0], [1], [0, 0, 1, 1], [], []>} : vector<32x128xbf16>, vector<128x512xbf16>, vector<32x512xf32> -> vector<32x512xf32>
    %155 = arith.addf %154, %0 : vector<32x512xf32>
    %c0_83 = arith.constant 0 : index
    %c0_84 = arith.constant 0 : index
    %156 = vector.load %arg10[%c0_83, %c0_84] : memref<32x512xf32, #tpu.memory_space<vmem>>, vector<32x512xf32>
    tpu.vector_store %arg10[%c0_83, %c0_84], %155 {strides = array<i32>} : memref<32x512xf32, #tpu.memory_space<vmem>>, vector<32x512xf32>,
    return
  }
}

</mosaic_0001>

<llo_original>
// kernel: bottleneck_v2_nhwc.1
$region0: #{bottleneck_v2_nhwc.1}
  #allocation0 [shape = 'u32[]', space=smem, size = 0x4, offset = 0x4, fixed_abs, tag = 'smem constant byte address 0x4 - core index']
  #allocation1 [shape = 'u32[72,128]{1,0:T(1,128)}', space=vmem, size = 0x9000, scoped, tag = 'internal scratch']
  #allocation2 [shape = 'bf16[2,18,128]{2,1,0:T(8,128)(2,1)}', space=vmem, size = 0x3000, scoped, tag = 'scratch operand']
  %s0 = inlined_call_operand.vmem [shape: f32[32,512], index: 0, kind: input, shape index: {}]
  %s1 = inlined_call_operand.vmem [shape: f32[1,512], index: 1, kind: input, shape index: {}]
  %s2 = inlined_call_operand.vmem [shape: f32[1,512], index: 2, kind: input, shape index: {}]
  %s3 = inlined_call_operand.vmem [shape: bf16[512,128], index: 3, kind: input, shape index: {}]
  %s4 = inlined_call_operand.vmem [shape: f32[1,128], index: 4, kind: input, shape index: {}]
  %s5 = inlined_call_operand.vmem [shape: f32[1,128], index: 5, kind: input, shape index: {}]
  %s6 = inlined_call_operand.vmem [shape: bf16[3,128,128], index: 6, kind: input, shape index: {}]
  %s7 = inlined_call_operand.vmem [shape: f32[1,128], index: 7, kind: input, shape index: {}]
  %s8 = inlined_call_operand.vmem [shape: f32[1,128], index: 8, kind: input, shape index: {}]
  %s9 = inlined_call_operand.vmem [shape: bf16[128,512], index: 9, kind: input, shape index: {}]
  %s10 = inlined_call_operand.vmem [shape: f32[32,512], index: 10, kind: output, shape index: {}]
  %s11 = sld [smem:[#allocation0]]
  $region50: #{bottleneck_v2_nhwc.1} parent=0
    _
  %s13 = ssub.s32 1, %s11
  %s14 = scalar_select 0, %s13, %s11
  // Predicated region
  $region2: #{bottleneck_v2_nhwc.1} parent=0 // pred_check
    _
  $region3: #{bottleneck_v2_nhwc.1} parent=0 // pred_check_branch
    %16 = sbr.rel (0) target = $region5
  $region4: #{bottleneck_v2_nhwc.1} parent=0 // pred_region
    _
  $region5: #{bottleneck_v2_nhwc.1} parent=0 // pred_fallthru
    _
  // Predicated region
  $region6: #{bottleneck_v2_nhwc.1} parent=0 // pred_check
    _
  $region7: #{bottleneck_v2_nhwc.1} parent=0 // pred_check_branch
    %18 = sbr.rel (0) target = $region9
  $region8: #{bottleneck_v2_nhwc.1} parent=0 // pred_region
    _
  $region9: #{bottleneck_v2_nhwc.1} parent=0 // pred_fallthru
    _
  // Predicated region
  $region10: #{bottleneck_v2_nhwc.1} parent=0 // pred_check
    _
  $region11: #{bottleneck_v2_nhwc.1} parent=0 // pred_check_branch
    %20 = sbr.rel (0) target = $region13
  $region12: #{bottleneck_v2_nhwc.1} parent=0 // pred_region
    _
  $region13: #{bottleneck_v2_nhwc.1} parent=0 // pred_fallthru
    _
  // Predicated region
  $region14: #{bottleneck_v2_nhwc.1} parent=0 // pred_check
    _
  $region15: #{bottleneck_v2_nhwc.1} parent=0 // pred_check_branch
    %22 = sbr.rel (0) target = $region17
  $region16: #{bottleneck_v2_nhwc.1} parent=0 // pred_region
    _
  $region17: #{bottleneck_v2_nhwc.1} parent=0 // pred_fallthru
    _
  // Predicated region
  $region18: #{bottleneck_v2_nhwc.1} parent=0 // pred_check
    _
  $region19: #{bottleneck_v2_nhwc.1} parent=0 // pred_check_branch
    %24 = sbr.rel (0) target = $region21
  $region20: #{bottleneck_v2_nhwc.1} parent=0 // pred_region
    _
  $region21: #{bottleneck_v2_nhwc.1} parent=0 // pred_fallthru
    _
  // Predicated region
  $region22: #{bottleneck_v2_nhwc.1} parent=0 // pred_check
    _
  $region23: #{bottleneck_v2_nhwc.1} parent=0 // pred_check_branch
    %26 = sbr.rel (0) target = $region25
  $region24: #{bottleneck_v2_nhwc.1} parent=0 // pred_region
    _
  $region25: #{bottleneck_v2_nhwc.1} parent=0 // pred_fallthru
    _
  // Predicated region
  $region26: #{bottleneck_v2_nhwc.1} parent=0 // pred_check
    _
  $region27: #{bottleneck_v2_nhwc.1} parent=0 // pred_check_branch
    %28 = sbr.rel (0) target = $region29
  $region28: #{bottleneck_v2_nhwc.1} parent=0 // pred_region
    _
  $region29: #{bottleneck_v2_nhwc.1} parent=0 // pred_fallthru
    _
  // Predicated region
  $region30: #{bottleneck_v2_nhwc.1} parent=0 // pred_check
    _
  $region31: #{bottleneck_v2_nhwc.1} parent=0 // pred_check_branch
    %30 = sbr.rel (0) target = $region33
  $region32: #{bottleneck_v2_nhwc.1} parent=0 // pred_region
    _
  $region33: #{bottleneck_v2_nhwc.1} parent=0 // pred_fallthru
    _
  // Predicated region
  $region34: #{bottleneck_v2_nhwc.1} parent=0 // pred_check
    _
  $region35: #{bottleneck_v2_nhwc.1} parent=0 // pred_check_branch
    %32 = sbr.rel (0) target = $region37
  $region36: #{bottleneck_v2_nhwc.1} parent=0 // pred_region
    _
  $region37: #{bottleneck_v2_nhwc.1} parent=0 // pred_fallthru
    _
  // Predicated region
  $region38: #{bottleneck_v2_nhwc.1} parent=0 // pred_check
    _
  $region39: #{bottleneck_v2_nhwc.1} parent=0 // pred_check_branch
    %34 = sbr.rel (0) target = $region41
  $region40: #{bottleneck_v2_nhwc.1} parent=0 // pred_region
    _
  $region41: #{bottleneck_v2_nhwc.1} parent=0 // pred_fallthru
    _
  %v36 = vld [vmem:[%s0] sm:$0xff]
  %v37 = vld [vmem:[%s0 + $0x8] sm:$0xff]
  %v38 = vld [vmem:[%s0 + $0x10] sm:$0xff]
  %v39 = vld [vmem:[%s0 + $0x18] sm:$0xff]
  %v40 = vld [vmem:[%s0 + $0x20] sm:$0xff]
  %v41 = vld [vmem:[%s0 + $0x28] sm:$0xff]
  %v42 = vld [vmem:[%s0 + $0x30] sm:$0xff]
  %v43 = vld [vmem:[%s0 + $0x38] sm:$0xff]
  %v44 = vld [vmem:[%s0 + $0x40] sm:$0xff]
  %v45 = vld [vmem:[%s0 + $0x48] sm:$0xff]
  %v46 = vld [vmem:[%s0 + $0x50] sm:$0xff]
  %v47 = vld [vmem:[%s0 + $0x58] sm:$0xff]
  %v48 = vld [vmem:[%s0 + $0x60] sm:$0xff]
  %v49 = vld [vmem:[%s0 + $0x68] sm:$0xff]
  %v50 = vld [vmem:[%s0 + $0x70] sm:$0xff]
  %v51 = vld [vmem:[%s0 + $0x78] sm:$0xff]
  %v52 = vld [vmem:[%s1] sm:$0xf]
  %v53 = vld [vmem:[%s2] sm:$0xf]
  %v54 = vadd.f32 %v36, %v40
  %v55 = vadd.f32 %v54, %v44
  %v56 = vadd.f32 %v55, %v48
  %v57 = vrot.slane %v56, 4
  %v58 = vadd.f32 %v56, %v57
  %v59 = vrot.slane %v58, 2
  %v60 = vadd.f32 %v58, %v59
  %v61 = vrot.slane %v60, 1
  %v62 = vadd.f32 %v60, %v61
  %v63 = vadd.f32 %v37, %v41
  %v64 = vadd.f32 %v63, %v45
  %v65 = vadd.f32 %v64, %v49
  %v66 = vrot.slane %v65, 4
  %v67 = vadd.f32 %v65, %v66
  %v68 = vrot.slane %v67, 2
  %v69 = vadd.f32 %v67, %v68
  %v70 = vrot.slane %v69, 1
  %v71 = vadd.f32 %v69, %v70
  %v72 = vadd.f32 %v38, %v42
  %v73 = vadd.f32 %v72, %v46
  %v74 = vadd.f32 %v73, %v50
  %v75 = vrot.slane %v74, 4
  %v76 = vadd.f32 %v74, %v75
  %v77 = vrot.slane %v76, 2
  %v78 = vadd.f32 %v76, %v77
  %v79 = vrot.slane %v78, 1
  %v80 = vadd.f32 %v78, %v79
  %v81 = vadd.f32 %v39, %v43
  %v82 = vadd.f32 %v81, %v47
  %v83 = vadd.f32 %v82, %v51
  %v84 = vrot.slane %v83, 4
  %v85 = vadd.f32 %v83, %v84
  %v86 = vrot.slane %v85, 2
  %v87 = vadd.f32 %v85, %v86
  %v88 = vrot.slane %v87, 1
  %v89 = vadd.f32 %v87, %v88
  %v90 = vadd.f32 %v62, %v80
  %v91 = vadd.f32 %v71, %v89
  %v92 = vadd.f32 %v90, %v91
  %93 = vrot.lane.b32.xlu0 %v92, 64
  %v94 = vpop.permute.xlu0 %93
  %v95 = vlaneseq
  %v96 = vand.u32 %v95, 127
  %v97 = vadd.f32 %v92, %v94
  %98 = vrot.lane.b32.xlu0 %v97, 32
  %v99 = vpop.permute.xlu0 %98
  %v100 = vadd.f32 %v97, %v99
  %v101 = vmul.f32 %v36, %v36
  %v102 = vmul.f32 %v37, %v37
  %v103 = vmul.f32 %v38, %v38
  %v104 = vmul.f32 %v39, %v39
  %v105 = vmul.f32 %v40, %v40
  %v106 = vmul.f32 %v41, %v41
  %v107 = vmul.f32 %v42, %v42
  %v108 = vmul.f32 %v43, %v43
  %v109 = vmul.f32 %v44, %v44
  %v110 = vmul.f32 %v45, %v45
  %v111 = vmul.f32 %v46, %v46
  %v112 = vmul.f32 %v47, %v47
  %v113 = vmul.f32 %v48, %v48
  %v114 = vmul.f32 %v49, %v49
  %v115 = vmul.f32 %v50, %v50
  %v116 = vmul.f32 %v51, %v51
  %v117 = vadd.f32 %v101, %v105
  %v118 = vadd.f32 %v117, %v109
  %v119 = vadd.f32 %v118, %v113
  %v120 = vrot.slane %v119, 4
  %v121 = vadd.f32 %v119, %v120
  %v122 = vrot.slane %v121, 2
  %v123 = vadd.f32 %v121, %v122
  %v124 = vrot.slane %v123, 1
  %v125 = vadd.f32 %v123, %v124
  %v126 = vadd.f32 %v102, %v106
  %v127 = vadd.f32 %v126, %v110
  %v128 = vadd.f32 %v127, %v114
  %v129 = vrot.slane %v128, 4
  %v130 = vadd.f32 %v128, %v129
  %v131 = vrot.slane %v130, 2
  %v132 = vadd.f32 %v130, %v131
  %v133 = vrot.slane %v132, 1
  %v134 = vadd.f32 %v132, %v133
  %v135 = vadd.f32 %v103, %v107
  %v136 = vadd.f32 %v135, %v111
  %v137 = vadd.f32 %v136, %v115
  %v138 = vrot.slane %v137, 4
  %v139 = vadd.f32 %v137, %v138
  %v140 = vrot.slane %v139, 2
  %v141 = vadd.f32 %v139, %v140
  %v142 = vrot.slane %v141, 1
  %v143 = vadd.f32 %v141, %v142
  %v144 = vadd.f32 %v104, %v108
  %v145 = vadd.f32 %v144, %v112
  %v146 = vadd.f32 %v145, %v116
  %v147 = vrot.slane %v146, 4
  %v148 = vadd.f32 %v146, %v147
  %v149 = vrot.slane %v148, 2
  %v150 = vadd.f32 %v148, %v149
  %v151 = vrot.slane %v150, 1
  %v152 = vadd.f32 %v150, %v151
  %v153 = vadd.f32 %v125, %v143
  %v154 = vadd.f32 %v134, %v152
  %v155 = vadd.f32 %v153, %v154
  %156 = vrot.lane.b32.xlu0 %v155, 64
  %v157 = vpop.permute.xlu0 %156
  %v158 = vadd.f32 %v155, %v157
  %159 = vrot.lane.b32.xlu0 %v158, 32
  %v160 = vpop.permute.xlu0 %159
  %v161 = vadd.f32 %v158, %v160
  %v162 = vmul.f32 %v100, 0.001953125
  %v163 = vmul.f32 %v161, 0.001953125
  %v164 = vmul.f32 %v162, %v162
  %v165 = vsub.f32 %v163, %v164
  %v166 = vadd.f32 %v165, 1e-05
  %v167 = vrsqrt.pop %v166
  %v168 = vmul.f32 %v167, %v166
  %v169 = vmul.f32 %v168, %v167
  %v170 = vmul.f32 0.5, %v169
  %v171 = vsub.f32 1.5, %v170
  %v172 = vmul.f32 %v167, %v171
  %vm173 = vweird.f32 %v166
  %vm174 = vweird.f32 %v167
  %vm175 = vmor %vm173, %vm174
  %v176 = vsel %vm175, %v167, %v172
  %v178 = vrot.slane %v176, 7
  %v179 = vrot.slane %v176, 6
  %v180 = vrot.slane %v176, 5
  %vm181 = vcmask 1040384
  %v182 = vsel %vm181, %v176, %v178
  %vm183 = vcmask 1042434
  %v184 = vsel %vm183, %v179, %v180
  %vm185 = vcmask 1041408
  %v186 = vsel %vm185, %v182, %v184
  %v188 = vmul.f32 %v52, %v186
  %v190 = vperm.slane %v188, 0
  %v191 = vperm.slane %v188, 1
  %v192 = vperm.slane %v188, 2
  %v193 = vperm.slane %v188, 3
  %v198 = vmul.f32 %v162, %v190
  %v199 = vmul.f32 %v162, %v191
  %v200 = vmul.f32 %v162, %v192
  %v201 = vmul.f32 %v162, %v193
  %v206 = vrot.slane %v199, 7
  %v207 = vrot.slane %v200, 6
  %v208 = vrot.slane %v201, 5
  %v209 = vsel %vm181, %v198, %v206
  %v210 = vsel %vm183, %v207, %v208
  %v211 = vsel %vm185, %v209, %v210
  %v213 = vsub.f32 %v53, %v211
  %v214 = vmul.f32 %v36, %v190
  %v215 = vmul.f32 %v37, %v191
  %v216 = vmul.f32 %v38, %v192
  %v217 = vmul.f32 %v39, %v193
  %v218 = vmul.f32 %v40, %v190
  %v219 = vmul.f32 %v41, %v191
  %v220 = vmul.f32 %v42, %v192
  %v221 = vmul.f32 %v43, %v193
  %v222 = vmul.f32 %v44, %v190
  %v223 = vmul.f32 %v45, %v191
  %v224 = vmul.f32 %v46, %v192
  %v225 = vmul.f32 %v47, %v193
  %v226 = vmul.f32 %v48, %v190
  %v227 = vmul.f32 %v49, %v191
  %v228 = vmul.f32 %v50, %v192
  %v229 = vmul.f32 %v51, %v193
  %v231 = vperm.slane %v213, 0
  %v232 = vperm.slane %v213, 1
  %v233 = vperm.slane %v213, 2
  %v234 = vperm.slane %v213, 3
  %v239 = vadd.f32 %v214, %v231
  %v240 = vadd.f32 %v215, %v232
  %v241 = vadd.f32 %v216, %v233
  %v242 = vadd.f32 %v217, %v234
  %v243 = vadd.f32 %v218, %v231
  %v244 = vadd.f32 %v219, %v232
  %v245 = vadd.f32 %v220, %v233
  %v246 = vadd.f32 %v221, %v234
  %v247 = vadd.f32 %v222, %v231
  %v248 = vadd.f32 %v223, %v232
  %v249 = vadd.f32 %v224, %v233
  %v250 = vadd.f32 %v225, %v234
  %v251 = vadd.f32 %v226, %v231
  %v252 = vadd.f32 %v227, %v232
  %v253 = vadd.f32 %v228, %v233
  %v254 = vadd.f32 %v229, %v234
  %v255 = vmax.f32 %v239, 0.0
  %v256 = vmax.f32 %v240, 0.0
  %v257 = vmax.f32 %v241, 0.0
  %v258 = vmax.f32 %v242, 0.0
  %v259 = vmax.f32 %v243, 0.0
  %v260 = vmax.f32 %v244, 0.0
  %v261 = vmax.f32 %v245, 0.0
  %v262 = vmax.f32 %v246, 0.0
  %v263 = vmax.f32 %v247, 0.0
  %v264 = vmax.f32 %v248, 0.0
  %v265 = vmax.f32 %v249, 0.0
  %v266 = vmax.f32 %v250, 0.0
  %v267 = vmax.f32 %v251, 0.0
  %v268 = vmax.f32 %v252, 0.0
  %v269 = vmax.f32 %v253, 0.0
  %v270 = vmax.f32 %v254, 0.0
  %v271 = vpack.c.bf16 %v259, %v255
  %v272 = vpack.c.bf16 %v260, %v256
  %v273 = vpack.c.bf16 %v261, %v257
  %v274 = vpack.c.bf16 %v262, %v258
  %v275 = vpack.c.bf16 %v267, %v263
  %v276 = vpack.c.bf16 %v268, %v264
  %v277 = vpack.c.bf16 %v269, %v265
  %v278 = vpack.c.bf16 %v270, %v266
  %v279 = vld [vmem:[%s3] sm:$0xf]
  %v280 = vld [vmem:[%s3 + $0x4] sm:$0xf]
  %v281 = vld [vmem:[%s3 + $0x8] sm:$0xf]
  %v282 = vld [vmem:[%s3 + $0xc] sm:$0xf]
  %v283 = vld [vmem:[%s3 + $0x10] sm:$0xf]
  %v284 = vld [vmem:[%s3 + $0x14] sm:$0xf]
  %v285 = vld [vmem:[%s3 + $0x18] sm:$0xf]
  %v286 = vld [vmem:[%s3 + $0x1c] sm:$0xf]
  %v287 = vld [vmem:[%s3 + $0x20] sm:$0xf]
  %v288 = vld [vmem:[%s3 + $0x24] sm:$0xf]
  %v289 = vld [vmem:[%s3 + $0x28] sm:$0xf]
  %v290 = vld [vmem:[%s3 + $0x2c] sm:$0xf]
  %v291 = vld [vmem:[%s3 + $0x30] sm:$0xf]
  %v292 = vld [vmem:[%s3 + $0x34] sm:$0xf]
  %v293 = vld [vmem:[%s3 + $0x38] sm:$0xf]
  %v294 = vld [vmem:[%s3 + $0x3c] sm:$0xf]
  %v295 = vld [vmem:[%s3 + $0x40] sm:$0xf]
  %v296 = vld [vmem:[%s3 + $0x44] sm:$0xf]
  %v297 = vld [vmem:[%s3 + $0x48] sm:$0xf]
  %v298 = vld [vmem:[%s3 + $0x4c] sm:$0xf]
  %v299 = vld [vmem:[%s3 + $0x50] sm:$0xf]
  %v300 = vld [vmem:[%s3 + $0x54] sm:$0xf]
  %v301 = vld [vmem:[%s3 + $0x58] sm:$0xf]
  %v302 = vld [vmem:[%s3 + $0x5c] sm:$0xf]
  %v303 = vld [vmem:[%s3 + $0x60] sm:$0xf]
  %v304 = vld [vmem:[%s3 + $0x64] sm:$0xf]
  %v305 = vld [vmem:[%s3 + $0x68] sm:$0xf]
  %v306 = vld [vmem:[%s3 + $0x6c] sm:$0xf]
  %v307 = vld [vmem:[%s3 + $0x70] sm:$0xf]
  %v308 = vld [vmem:[%s3 + $0x74] sm:$0xf]
  %v309 = vld [vmem:[%s3 + $0x78] sm:$0xf]
  %v310 = vld [vmem:[%s3 + $0x7c] sm:$0xf]
  %v311 = vld [vmem:[%s3 + $0x80] sm:$0xf]
  %v312 = vld [vmem:[%s3 + $0x84] sm:$0xf]
  %v313 = vld [vmem:[%s3 + $0x88] sm:$0xf]
  %v314 = vld [vmem:[%s3 + $0x8c] sm:$0xf]
  %v315 = vld [vmem:[%s3 + $0x90] sm:$0xf]
  %v316 = vld [vmem:[%s3 + $0x94] sm:$0xf]
  %v317 = vld [vmem:[%s3 + $0x98] sm:$0xf]
  %v318 = vld [vmem:[%s3 + $0x9c] sm:$0xf]
  %v319 = vld [vmem:[%s3 + $0xa0] sm:$0xf]
  %v320 = vld [vmem:[%s3 + $0xa4] sm:$0xf]
  %v321 = vld [vmem:[%s3 + $0xa8] sm:$0xf]
  %v322 = vld [vmem:[%s3 + $0xac] sm:$0xf]
  %v323 = vld [vmem:[%s3 + $0xb0] sm:$0xf]
  %v324 = vld [vmem:[%s3 + $0xb4] sm:$0xf]
  %v325 = vld [vmem:[%s3 + $0xb8] sm:$0xf]
  %v326 = vld [vmem:[%s3 + $0xbc] sm:$0xf]
  %v327 = vld [vmem:[%s3 + $0xc0] sm:$0xf]
  %v328 = vld [vmem:[%s3 + $0xc4] sm:$0xf]
  %v329 = vld [vmem:[%s3 + $0xc8] sm:$0xf]
  %v330 = vld [vmem:[%s3 + $0xcc] sm:$0xf]
  %v331 = vld [vmem:[%s3 + $0xd0] sm:$0xf]
  %v332 = vld [vmem:[%s3 + $0xd4] sm:$0xf]
  %v333 = vld [vmem:[%s3 + $0xd8] sm:$0xf]
  %v334 = vld [vmem:[%s3 + $0xdc] sm:$0xf]
  %v335 = vld [vmem:[%s3 + $0xe0] sm:$0xf]
  %v336 = vld [vmem:[%s3 + $0xe4] sm:$0xf]
  %v337 = vld [vmem:[%s3 + $0xe8] sm:$0xf]
  %v338 = vld [vmem:[%s3 + $0xec] sm:$0xf]
  %v339 = vld [vmem:[%s3 + $0xf0] sm:$0xf]
  %v340 = vld [vmem:[%s3 + $0xf4] sm:$0xf]
  %v341 = vld [vmem:[%s3 + $0xf8] sm:$0xf]
  %v342 = vld [vmem:[%s3 + $0xfc] sm:$0xf]
  %v407 = vunpack.c.l.b16 %v279
  %v408 = vunpack.c.l.b16 %v280
  %v409 = vunpack.c.l.b16 %v281
  %v410 = vunpack.c.l.b16 %v282
  %v411 = vunpack.c.l.b16 %v283
  %v412 = vunpack.c.l.b16 %v284
  %v413 = vunpack.c.l.b16 %v285
  %v414 = vunpack.c.l.b16 %v286
  %v415 = vunpack.c.l.b16 %v287
  %v416 = vunpack.c.l.b16 %v288
  %v417 = vunpack.c.l.b16 %v289
  %v418 = vunpack.c.l.b16 %v290
  %v419 = vunpack.c.l.b16 %v291
  %v420 = vunpack.c.l.b16 %v292
  %v421 = vunpack.c.l.b16 %v293
  %v422 = vunpack.c.l.b16 %v294
  %v423 = vunpack.c.l.b16 %v295
  %v424 = vunpack.c.l.b16 %v296
  %v425 = vunpack.c.l.b16 %v297
  %v426 = vunpack.c.l.b16 %v298
  %v427 = vunpack.c.l.b16 %v299
  %v428 = vunpack.c.l.b16 %v300
  %v429 = vunpack.c.l.b16 %v301
  %v430 = vunpack.c.l.b16 %v302
  %v431 = vunpack.c.l.b16 %v303
  %v432 = vunpack.c.l.b16 %v304
  %v433 = vunpack.c.l.b16 %v305
  %v434 = vunpack.c.l.b16 %v306
  %v435 = vunpack.c.l.b16 %v307
  %v436 = vunpack.c.l.b16 %v308
  %v437 = vunpack.c.l.b16 %v309
  %v438 = vunpack.c.l.b16 %v310
  %v439 = vunpack.c.l.b16 %v311
  %v440 = vunpack.c.l.b16 %v312
  %v441 = vunpack.c.l.b16 %v313
  %v442 = vunpack.c.l.b16 %v314
  %v443 = vunpack.c.l.b16 %v315
  %v444 = vunpack.c.l.b16 %v316
  %v445 = vunpack.c.l.b16 %v317
  %v446 = vunpack.c.l.b16 %v318
  %v447 = vunpack.c.l.b16 %v319
  %v448 = vunpack.c.l.b16 %v320
  %v449 = vunpack.c.l.b16 %v321
  %v450 = vunpack.c.l.b16 %v322
  %v451 = vunpack.c.l.b16 %v323
  %v452 = vunpack.c.l.b16 %v324
  %v453 = vunpack.c.l.b16 %v325
  %v454 = vunpack.c.l.b16 %v326
  %v455 = vunpack.c.l.b16 %v327
  %v456 = vunpack.c.l.b16 %v328
  %v457 = vunpack.c.l.b16 %v329
  %v458 = vunpack.c.l.b16 %v330
  %v459 = vunpack.c.l.b16 %v331
  %v460 = vunpack.c.l.b16 %v332
  %v461 = vunpack.c.l.b16 %v333
  %v462 = vunpack.c.l.b16 %v334
  %v463 = vunpack.c.l.b16 %v335
  %v464 = vunpack.c.l.b16 %v336
  %v465 = vunpack.c.l.b16 %v337
  %v466 = vunpack.c.l.b16 %v338
  %v467 = vunpack.c.l.b16 %v339
  %v468 = vunpack.c.l.b16 %v340
  %v469 = vunpack.c.l.b16 %v341
  %v470 = vunpack.c.l.b16 %v342
  %v471 = vpack.c.b16 %v408, %v407
  %v472 = vpack.c.b16 %v410, %v409
  %v473 = vpack.c.b16 %v412, %v411
  %v474 = vpack.c.b16 %v414, %v413
  %v475 = vpack.c.b16 %v416, %v415
  %v476 = vpack.c.b16 %v418, %v417
  %v477 = vpack.c.b16 %v420, %v419
  %v478 = vpack.c.b16 %v422, %v421
  %v479 = vpack.c.b16 %v424, %v423
  %v480 = vpack.c.b16 %v426, %v425
  %v481 = vpack.c.b16 %v428, %v427
  %v482 = vpack.c.b16 %v430, %v429
  %v483 = vpack.c.b16 %v432, %v431
  %v484 = vpack.c.b16 %v434, %v433
  %v485 = vpack.c.b16 %v436, %v435
  %v486 = vpack.c.b16 %v438, %v437
  %v487 = vpack.c.b16 %v440, %v439
  %v488 = vpack.c.b16 %v442, %v441
  %v489 = vpack.c.b16 %v444, %v443
  %v490 = vpack.c.b16 %v446, %v445
  %v491 = vpack.c.b16 %v448, %v447
  %v492 = vpack.c.b16 %v450, %v449
  %v493 = vpack.c.b16 %v452, %v451
  %v494 = vpack.c.b16 %v454, %v453
  %v495 = vpack.c.b16 %v456, %v455
  %v496 = vpack.c.b16 %v458, %v457
  %v497 = vpack.c.b16 %v460, %v459
  %v498 = vpack.c.b16 %v462, %v461
  %v499 = vpack.c.b16 %v464, %v463
  %v500 = vpack.c.b16 %v466, %v465
  %v501 = vpack.c.b16 %v468, %v467
  %v502 = vpack.c.b16 %v470, %v469
  %535 = vmatpush.bf16.msra.mxu0 %v478
  %536 = vmatpush.bf16.msra.mxu0 %v477
  %537 = vmatpush.bf16.msra.mxu0 %v476
  %538 = vmatpush.bf16.msra.mxu0 %v475
  %539 = vmatpush.bf16.msra.mxu0 %v474
  %540 = vmatpush.bf16.msra.mxu0 %v473
  %541 = vmatpush.bf16.msra.mxu0 %v472
  %542 = vmatpush.bf16.msra.mxu0 %v471
  %543 = vmatmul.bf16.gmra.mxu0 %v271
  %v544 = vpop.f32.mrf.mxu0
  %v545 = vadd.f32 0.0, %v544
  %v546 = vpop.f32.mrf.mxu0
  %v547 = vadd.f32 0.0, %v546
  %548 = vmatmul.bf16.gmra.mxu0 %v275
  %v549 = vpop.f32.mrf.mxu0
  %v550 = vadd.f32 0.0, %v549
  %v551 = vpop.f32.mrf.mxu0
  %v552 = vadd.f32 0.0, %v551
  %553 = vdwg.mxu0
  %554 = vmatpush.bf16.msra.mxu0 %v486
  %555 = vmatpush.bf16.msra.mxu0 %v485
  %556 = vmatpush.bf16.msra.mxu0 %v484
  %557 = vmatpush.bf16.msra.mxu0 %v483
  %558 = vmatpush.bf16.msra.mxu0 %v482
  %559 = vmatpush.bf16.msra.mxu0 %v481
  %560 = vmatpush.bf16.msra.mxu0 %v480
  %561 = vmatpush.bf16.msra.mxu0 %v479
  %562 = vmatmul.bf16.gmra.mxu0 %v272
  %v563 = vpop.f32.mrf.mxu0
  %v564 = vadd.f32 %v545, %v563
  %v565 = vpop.f32.mrf.mxu0
  %v566 = vadd.f32 %v547, %v565
  %567 = vmatmul.bf16.gmra.mxu0 %v276
  %v568 = vpop.f32.mrf.mxu0
  %v569 = vadd.f32 %v550, %v568
  %v570 = vpop.f32.mrf.mxu0
  %v571 = vadd.f32 %v552, %v570
  %572 = vdwg.mxu0
  %573 = vmatpush.bf16.msra.mxu0 %v494
  %574 = vmatpush.bf16.msra.mxu0 %v493
  %575 = vmatpush.bf16.msra.mxu0 %v492
  %576 = vmatpush.bf16.msra.mxu0 %v491
  %577 = vmatpush.bf16.msra.mxu0 %v490
  %578 = vmatpush.bf16.msra.mxu0 %v489
  %579 = vmatpush.bf16.msra.mxu0 %v488
  %580 = vmatpush.bf16.msra.mxu0 %v487
  %581 = vmatmul.bf16.gmra.mxu0 %v273
  %v582 = vpop.f32.mrf.mxu0
  %v583 = vadd.f32 %v564, %v582
  %v584 = vpop.f32.mrf.mxu0
  %v585 = vadd.f32 %v566, %v584
  %586 = vmatmul.bf16.gmra.mxu0 %v277
  %v587 = vpop.f32.mrf.mxu0
  %v588 = vadd.f32 %v569, %v587
  %v589 = vpop.f32.mrf.mxu0
  %v590 = vadd.f32 %v571, %v589
  %591 = vdwg.mxu0
  %592 = vmatpush.bf16.msra.mxu0 %v502
  %593 = vmatpush.bf16.msra.mxu0 %v501
  %594 = vmatpush.bf16.msra.mxu0 %v500
  %595 = vmatpush.bf16.msra.mxu0 %v499
  %596 = vmatpush.bf16.msra.mxu0 %v498
  %597 = vmatpush.bf16.msra.mxu0 %v497
  %598 = vmatpush.bf16.msra.mxu0 %v496
  %599 = vmatpush.bf16.msra.mxu0 %v495
  %600 = vmatmul.bf16.gmra.mxu0 %v274
  %v601 = vpop.f32.mrf.mxu0
  %v602 = vadd.f32 %v583, %v601
  %v603 = vpop.f32.mrf.mxu0
  %v604 = vadd.f32 %v585, %v603
  %605 = vmatmul.bf16.gmra.mxu0 %v278
  %v606 = vpop.f32.mrf.mxu0
  %v607 = vadd.f32 %v588, %v606
  %v608 = vpop.f32.mrf.mxu0
  %v609 = vadd.f32 %v590, %v608
  %610 = vdwg.mxu0
  %v611 = vld [vmem:[%s4] sm:$0x1]
  %v612 = vld [vmem:[%s5] sm:$0x1]
  %v613 = vadd.f32 %v602, %v604
  %v614 = vadd.f32 %v613, %v607
  %v615 = vadd.f32 %v614, %v609
  %v616 = vrot.slane %v615, 4
  %v617 = vadd.f32 %v615, %v616
  %v618 = vrot.slane %v617, 2
  %v619 = vadd.f32 %v617, %v618
  %v620 = vrot.slane %v619, 1
  %v621 = vadd.f32 %v619, %v620
  %622 = vrot.lane.b32.xlu0 %v621, 64
  %v623 = vpop.permute.xlu0 %622
  %v624 = vadd.f32 %v621, %v623
  %625 = vrot.lane.b32.xlu0 %v624, 32
  %v626 = vpop.permute.xlu0 %625
  %v627 = vadd.f32 %v624, %v626
  %628 = vrot.lane.b32.xlu0 %v627, 16
  %v629 = vpop.permute.xlu0 %628
  %v630 = vadd.f32 %v627, %v629
  %631 = vrot.lane.b32.xlu0 %v630, 8
  %v632 = vpop.permute.xlu0 %631
  %v633 = vadd.f32 %v630, %v632
  %v634 = vmul.f32 %v602, %v602
  %v635 = vmul.f32 %v604, %v604
  %v636 = vmul.f32 %v607, %v607
  %v637 = vmul.f32 %v609, %v609
  %v638 = vadd.f32 %v634, %v635
  %v639 = vadd.f32 %v638, %v636
  %v640 = vadd.f32 %v639, %v637
  %v641 = vrot.slane %v640, 4
  %v642 = vadd.f32 %v640, %v641
  %v643 = vrot.slane %v642, 2
  %v644 = vadd.f32 %v642, %v643
  %v645 = vrot.slane %v644, 1
  %v646 = vadd.f32 %v644, %v645
  %647 = vrot.lane.b32.xlu0 %v646, 64
  %v648 = vpop.permute.xlu0 %647
  %v649 = vadd.f32 %v646, %v648
  %650 = vrot.lane.b32.xlu0 %v649, 32
  %v651 = vpop.permute.xlu0 %650
  %v652 = vadd.f32 %v649, %v651
  %653 = vrot.lane.b32.xlu0 %v652, 16
  %v654 = vpop.permute.xlu0 %653
  %v655 = vadd.f32 %v652, %v654
  %656 = vrot.lane.b32.xlu0 %v655, 8
  %v657 = vpop.permute.xlu0 %656
  %v658 = vadd.f32 %v655, %v657
  %v659 = vmul.f32 %v633, 0.001953125
  %v660 = vmul.f32 %v658, 0.001953125
  %v661 = vmul.f32 %v659, %v659
  %v662 = vsub.f32 %v660, %v661
  %v663 = vadd.f32 %v662, 1e-05
  %v664 = vrsqrt.pop %v663
  %v665 = vmul.f32 %v664, %v663
  %v666 = vmul.f32 %v665, %v664
  %v667 = vmul.f32 0.5, %v666
  %v668 = vsub.f32 1.5, %v667
  %v669 = vmul.f32 %v664, %v668
  %vm670 = vweird.f32 %v663
  %vm671 = vweird.f32 %v664
  %vm672 = vmor %vm670, %vm671
  %v673 = vsel %vm672, %v664, %v669
  %v674 = vmul.f32 %v611, %v673
  %v675 = vmul.f32 %v659, %v674
  %v676 = vsub.f32 %v612, %v675
  %v678 = vperm.slane %v674, 0
  %v680 = vmul.f32 %v602, %v678
  %v681 = vmul.f32 %v604, %v678
  %v682 = vmul.f32 %v607, %v678
  %v683 = vmul.f32 %v609, %v678
  %v685 = vperm.slane %v676, 0
  %v687 = vadd.f32 %v680, %v685
  %v688 = vadd.f32 %v681, %v685
  %v689 = vadd.f32 %v682, %v685
  %v690 = vadd.f32 %v683, %v685
  %v691 = vmax.f32 %v687, 0.0
  %v692 = vmax.f32 %v688, 0.0
  %v693 = vmax.f32 %v689, 0.0
  %v694 = vmax.f32 %v690, 0.0
  %v695 = vpack.c.bf16 %v691, %v691
  %v696 = vpack.c.bf16 %v692, %v692
  %v697 = vpack.c.bf16 %v693, %v693
  %v698 = vpack.c.bf16 %v694, %v694
  %vm699 = vcmask 1040384
  %vm700 = vsmask.f32 256
  %vm701 = vmand %vm699, %vm700
  %v702 = vld [vmem:[#allocation2] sm:$0x1]
  %v703 = vsel %vm701, 0, %v702
  %704 = vst [vmem:[#allocation2] sm:$0x1] %v703
  %v705 = vld [vmem:[#allocation2 + $0xc] sm:$0x1]
  %v706 = vsel %vm701, 0, %v705
  %707 = vst [vmem:[#allocation2 + $0xc] sm:$0x1] %v706
  %vm708 = vsmask.f32 7938
  %vm709 = vmand %vm699, %vm708
  %v710 = vld [vmem:[#allocation2 + $0x8] sm:$0x1]
  %v711 = vsel %vm709, 0, %v710
  %712 = vst [vmem:[#allocation2 + $0x8] sm:$0x1] %v711
  %v713 = vld [vmem:[#allocation2 + $0x14] sm:$0x1]
  %v714 = vsel %vm709, 0, %v713
  %715 = vst [vmem:[#allocation2 + $0x14] sm:$0x1] %v714
  %vm716 = vsmask.f32 4368
  %vm717 = vmor %vm700, %vm716
  %v719 = vshrl.u32 %v695, 16
  %v721 = vrot.slane %v719, 7
  %v722 = vshll.u32 %v695, 16
  %v724 = vor.u32 %v721, %v722
  %v725 = vrot.slane %v721, 4
  %v727 = vshrl.u32 %v696, 16
  %v729 = vrot.slane %v727, 7
  %v730 = vshll.u32 %v696, 16
  %v732 = vor.u32 %v729, %v730
  %v733 = vsel %vm717, %v725, %v732
  %v734 = vrot.slane %v729, 4
  %v736 = vshrl.u32 %v697, 16
  %v738 = vrot.slane %v736, 7
  %v739 = vshll.u32 %v697, 16
  %v741 = vor.u32 %v738, %v739
  %v742 = vrot.slane %v738, 4
  %v744 = vshrl.u32 %v698, 16
  %v746 = vrot.slane %v744, 7
  %v747 = vshll.u32 %v698, 16
  %v749 = vor.u32 %v746, %v747
  %v750 = vsel %vm717, %v742, %v749
  %v751 = vrot.slane %v746, 4
  %vm758 = vcmask 1043456
  %vm759 = vmand %vm758, %vm708
  %v760 = vld [vmem:[#allocation2] sm:$0xf]
  %v761 = vsel %vm759, %v724, %v760
  %762 = vst [vmem:[#allocation2] sm:$0xf] %v761
  %763 = vst [vmem:[#allocation2 + $0x4] sm:$0xf] %v733
  %v764 = vld [vmem:[#allocation2 + $0x8] sm:$0x1]
  %v765 = vsel %vm701, %v734, %v764
  %766 = vst [vmem:[#allocation2 + $0x8] sm:$0x1] %v765
  %v767 = vld [vmem:[#allocation2 + $0xc] sm:$0xf]
  %v768 = vsel %vm759, %v741, %v767
  %769 = vst [vmem:[#allocation2 + $0xc] sm:$0xf] %v768
  %770 = vst [vmem:[#allocation2 + $0x10] sm:$0xf] %v750
  %v771 = vld [vmem:[#allocation2 + $0x14] sm:$0x1]
  %v772 = vsel %vm701, %v751, %v771
  %773 = vst [vmem:[#allocation2 + $0x14] sm:$0x1] %v772
  %v774 = vld [vmem:[#allocation2] sm:$0xf]
  %v775 = vld [vmem:[#allocation2 + $0x4] sm:$0xf]
  %v776 = vld [vmem:[#allocation2 + $0xc] sm:$0xf]
  %v777 = vld [vmem:[#allocation2 + $0x10] sm:$0xf]
  %v778 = vld [vmem:[%s6] sm:$0xf]
  %v779 = vld [vmem:[%s6 + $0x4] sm:$0xf]
  %v780 = vld [vmem:[%s6 + $0x8] sm:$0xf]
  %v781 = vld [vmem:[%s6 + $0xc] sm:$0xf]
  %v782 = vld [vmem:[%s6 + $0x10] sm:$0xf]
  %v783 = vld [vmem:[%s6 + $0x14] sm:$0xf]
  %v784 = vld [vmem:[%s6 + $0x18] sm:$0xf]
  %v785 = vld [vmem:[%s6 + $0x1c] sm:$0xf]
  %v786 = vld [vmem:[%s6 + $0x20] sm:$0xf]
  %v787 = vld [vmem:[%s6 + $0x24] sm:$0xf]
  %v788 = vld [vmem:[%s6 + $0x28] sm:$0xf]
  %v789 = vld [vmem:[%s6 + $0x2c] sm:$0xf]
  %v790 = vld [vmem:[%s6 + $0x30] sm:$0xf]
  %v791 = vld [vmem:[%s6 + $0x34] sm:$0xf]
  %v792 = vld [vmem:[%s6 + $0x38] sm:$0xf]
  %v793 = vld [vmem:[%s6 + $0x3c] sm:$0xf]
  %v794 = vld [vmem:[#allocation2 + $0x8] sm:$0x1]
  %v795 = vld [vmem:[#allocation2 + $0x14] sm:$0x1]
  %vm796 = vsmask.f32 3328
  %vm797 = vsmask.f32 7440
  %vm798 = vmor %vm796, %vm797
  %v800 = vshrl.u32 %v774, 16
  %v802 = vrot.slane %v800, 4
  %v803 = vshll.u32 %v774, 16
  %v805 = vrot.slane %v803, 5
  %v806 = vor.u32 %v802, %v805
  %v807 = vrot.slane %v806, 4
  %v809 = vshll.u32 %v775, 16
  %v811 = vrot.slane %v809, 5
  %v812 = vsel %vm798, %v807, %v811
  %v813 = vshrl.u32 %v775, 16
  %v815 = vrot.slane %v813, 4
  %v816 = vor.u32 %v815, %v811
  %v817 = vrot.slane %v816, 4
  %v819 = vshll.u32 %v794, 16
  %v821 = vrot.slane %v819, 5
  %v822 = vsel %vm798, %v817, %v821
  %v824 = vshrl.u32 %v776, 16
  %v826 = vrot.slane %v824, 4
  %v827 = vshll.u32 %v776, 16
  %v829 = vrot.slane %v827, 5
  %v830 = vor.u32 %v826, %v829
  %v831 = vrot.slane %v830, 4
  %v833 = vshll.u32 %v777, 16
  %v835 = vrot.slane %v833, 5
  %v836 = vsel %vm798, %v831, %v835
  %v837 = vshrl.u32 %v777, 16
  %v839 = vrot.slane %v837, 4
  %v840 = vor.u32 %v839, %v835
  %v841 = vrot.slane %v840, 4
  %v843 = vshll.u32 %v795, 16
  %v845 = vrot.slane %v843, 5
  %v846 = vsel %vm798, %v841, %v845
  %s847 = scalar_lea.vmem %s6, 64
  %v848 = vld [vmem:[%s847] sm:$0xf]
  %v849 = vld [vmem:[%s847 + $0x4] sm:$0xf]
  %v850 = vld [vmem:[%s847 + $0x8] sm:$0xf]
  %v851 = vld [vmem:[%s847 + $0xc] sm:$0xf]
  %v852 = vld [vmem:[%s847 + $0x10] sm:$0xf]
  %v853 = vld [vmem:[%s847 + $0x14] sm:$0xf]
  %v854 = vld [vmem:[%s847 + $0x18] sm:$0xf]
  %v855 = vld [vmem:[%s847 + $0x1c] sm:$0xf]
  %v856 = vld [vmem:[%s847 + $0x20] sm:$0xf]
  %v857 = vld [vmem:[%s847 + $0x24] sm:$0xf]
  %v858 = vld [vmem:[%s847 + $0x28] sm:$0xf]
  %v859 = vld [vmem:[%s847 + $0x2c] sm:$0xf]
  %v860 = vld [vmem:[%s847 + $0x30] sm:$0xf]
  %v861 = vld [vmem:[%s847 + $0x34] sm:$0xf]
  %v862 = vld [vmem:[%s847 + $0x38] sm:$0xf]
  %v863 = vld [vmem:[%s847 + $0x3c] sm:$0xf]
  %v864 = vunpack.c.l.b16 %v812
  %v865 = vunpack.c.l.b16 %v822
  %v866 = vunpack.c.l.b16 %v836
  %v867 = vunpack.c.l.b16 %v846
  %v868 = vpack.c.b16 %v865, %v864
  %v869 = vpack.c.b16 %v867, %v866
  %v888 = vunpack.c.l.b16 %v848
  %v889 = vunpack.c.l.b16 %v849
  %v890 = vunpack.c.l.b16 %v850
  %v891 = vunpack.c.l.b16 %v851
  %v892 = vunpack.c.l.b16 %v852
  %v893 = vunpack.c.l.b16 %v853
  %v894 = vunpack.c.l.b16 %v854
  %v895 = vunpack.c.l.b16 %v855
  %v896 = vunpack.c.l.b16 %v856
  %v897 = vunpack.c.l.b16 %v857
  %v898 = vunpack.c.l.b16 %v858
  %v899 = vunpack.c.l.b16 %v859
  %v900 = vunpack.c.l.b16 %v860
  %v901 = vunpack.c.l.b16 %v861
  %v902 = vunpack.c.l.b16 %v862
  %v903 = vunpack.c.l.b16 %v863
  %v904 = vpack.c.b16 %v889, %v888
  %v905 = vpack.c.b16 %v891, %v890
  %v906 = vpack.c.b16 %v893, %v892
  %v907 = vpack.c.b16 %v895, %v894
  %v908 = vpack.c.b16 %v897, %v896
  %v909 = vpack.c.b16 %v899, %v898
  %v910 = vpack.c.b16 %v901, %v900
  %v911 = vpack.c.b16 %v903, %v902
  %920 = vmatpush.bf16.msra.mxu0 %v911
  %921 = vmatpush.bf16.msra.mxu0 %v910
  %922 = vmatpush.bf16.msra.mxu0 %v909
  %923 = vmatpush.bf16.msra.mxu0 %v908
  %924 = vmatpush.bf16.msra.mxu0 %v907
  %925 = vmatpush.bf16.msra.mxu0 %v906
  %926 = vmatpush.bf16.msra.mxu0 %v905
  %927 = vmatpush.bf16.msra.mxu0 %v904
  %928 = vmatmul.bf16.gmra.mxu0 %v868
  %v929 = vpop.f32.mrf.mxu0
  %v930 = vadd.f32 0.0, %v929
  %v931 = vpop.f32.mrf.mxu0
  %v932 = vadd.f32 0.0, %v931
  %933 = vmatmul.bf16.gmra.mxu0 %v869
  %v934 = vpop.f32.mrf.mxu0
  %v935 = vadd.f32 0.0, %v934
  %v936 = vpop.f32.mrf.mxu0
  %v937 = vadd.f32 0.0, %v936
  %938 = vdwg.mxu0
  %v943 = vunpack.c.l.b16 %v774
  %v944 = vunpack.c.l.b16 %v775
  %v945 = vunpack.c.l.b16 %v776
  %v946 = vunpack.c.l.b16 %v777
  %v947 = vpack.c.b16 %v944, %v943
  %v948 = vpack.c.b16 %v946, %v945
  %v967 = vunpack.c.l.b16 %v778
  %v968 = vunpack.c.l.b16 %v779
  %v969 = vunpack.c.l.b16 %v780
  %v970 = vunpack.c.l.b16 %v781
  %v971 = vunpack.c.l.b16 %v782
  %v972 = vunpack.c.l.b16 %v783
  %v973 = vunpack.c.l.b16 %v784
  %v974 = vunpack.c.l.b16 %v785
  %v975 = vunpack.c.l.b16 %v786
  %v976 = vunpack.c.l.b16 %v787
  %v977 = vunpack.c.l.b16 %v788
  %v978 = vunpack.c.l.b16 %v789
  %v979 = vunpack.c.l.b16 %v790
  %v980 = vunpack.c.l.b16 %v791
  %v981 = vunpack.c.l.b16 %v792
  %v982 = vunpack.c.l.b16 %v793
  %v983 = vpack.c.b16 %v968, %v967
  %v984 = vpack.c.b16 %v970, %v969
  %v985 = vpack.c.b16 %v972, %v971
  %v986 = vpack.c.b16 %v974, %v973
  %v987 = vpack.c.b16 %v976, %v975
  %v988 = vpack.c.b16 %v978, %v977
  %v989 = vpack.c.b16 %v980, %v979
  %v990 = vpack.c.b16 %v982, %v981
  %999 = vmatpush.bf16.msra.mxu0 %v990
  %1000 = vmatpush.bf16.msra.mxu0 %v989
  %1001 = vmatpush.bf16.msra.mxu0 %v988
  %1002 = vmatpush.bf16.msra.mxu0 %v987
  %1003 = vmatpush.bf16.msra.mxu0 %v986
  %1004 = vmatpush.bf16.msra.mxu0 %v985
  %1005 = vmatpush.bf16.msra.mxu0 %v984
  %1006 = vmatpush.bf16.msra.mxu0 %v983
  %1007 = vmatmul.bf16.gmra.mxu0 %v947
  %v1008 = vpop.f32.mrf.mxu0
  %v1009 = vadd.f32 %v930, %v1008
  %v1010 = vpop.f32.mrf.mxu0
  %v1011 = vadd.f32 %v932, %v1010
  %1012 = vmatmul.bf16.gmra.mxu0 %v948
  %v1013 = vpop.f32.mrf.mxu0
  %v1014 = vadd.f32 %v935, %v1013
  %v1015 = vpop.f32.mrf.mxu0
  %v1016 = vadd.f32 %v937, %v1015
  %1017 = vdwg.mxu0
  %v1018 = vld [vmem:[#allocation2] sm:$0xe]
  %v1019 = vld [vmem:[#allocation2 + $0xc] sm:$0xe]
  %vm1024 = vcmask 1042432
  %vm1025 = vcmask 1046532
  %vm1026 = vmor %vm1024, %vm1025
  %v1027 = vrot.slane %v1018, 5
  %v1028 = vrot.slane %v1027, 4
  %v1029 = vrot.slane %v775, 5
  %v1030 = vsel %vm1026, %v1028, %v1029
  %v1031 = vrot.slane %v1029, 4
  %v1032 = vrot.slane %v794, 5
  %v1033 = vsel %vm1026, %v1031, %v1032
  %v1034 = vrot.slane %v1019, 5
  %v1035 = vrot.slane %v1034, 4
  %v1036 = vrot.slane %v777, 5
  %v1037 = vsel %vm1026, %v1035, %v1036
  %v1038 = vrot.slane %v1036, 4
  %v1039 = vrot.slane %v795, 5
  %v1040 = vsel %vm1026, %v1038, %v1039
  %s1041 = scalar_lea.vmem %s6, 128
  %v1042 = vld [vmem:[%s1041] sm:$0xf]
  %v1043 = vld [vmem:[%s1041 + $0x4] sm:$0xf]
  %v1044 = vld [vmem:[%s1041 + $0x8] sm:$0xf]
  %v1045 = vld [vmem:[%s1041 + $0xc] sm:$0xf]
  %v1046 = vld [vmem:[%s1041 + $0x10] sm:$0xf]
  %v1047 = vld [vmem:[%s1041 + $0x14] sm:$0xf]
  %v1048 = vld [vmem:[%s1041 + $0x18] sm:$0xf]
  %v1049 = vld [vmem:[%s1041 + $0x1c] sm:$0xf]
  %v1050 = vld [vmem:[%s1041 + $0x20] sm:$0xf]
  %v1051 = vld [vmem:[%s1041 + $0x24] sm:$0xf]
  %v1052 = vld [vmem:[%s1041 + $0x28] sm:$0xf]
  %v1053 = vld [vmem:[%s1041 + $0x2c] sm:$0xf]
  %v1054 = vld [vmem:[%s1041 + $0x30] sm:$0xf]
  %v1055 = vld [vmem:[%s1041 + $0x34] sm:$0xf]
  %v1056 = vld [vmem:[%s1041 + $0x38] sm:$0xf]
  %v1057 = vld [vmem:[%s1041 + $0x3c] sm:$0xf]
  %v1058 = vunpack.c.l.b16 %v1030
  %v1059 = vunpack.c.l.b16 %v1033
  %v1060 = vunpack.c.l.b16 %v1037
  %v1061 = vunpack.c.l.b16 %v1040
  %v1062 = vpack.c.b16 %v1059, %v1058
  %v1063 = vpack.c.b16 %v1061, %v1060
  %v1082 = vunpack.c.l.b16 %v1042
  %v1083 = vunpack.c.l.b16 %v1043
  %v1084 = vunpack.c.l.b16 %v1044
  %v1085 = vunpack.c.l.b16 %v1045
  %v1086 = vunpack.c.l.b16 %v1046
  %v1087 = vunpack.c.l.b16 %v1047
  %v1088 = vunpack.c.l.b16 %v1048
  %v1089 = vunpack.c.l.b16 %v1049
  %v1090 = vunpack.c.l.b16 %v1050
  %v1091 = vunpack.c.l.b16 %v1051
  %v1092 = vunpack.c.l.b16 %v1052
  %v1093 = vunpack.c.l.b16 %v1053
  %v1094 = vunpack.c.l.b16 %v1054
  %v1095 = vunpack.c.l.b16 %v1055
  %v1096 = vunpack.c.l.b16 %v1056
  %v1097 = vunpack.c.l.b16 %v1057
  %v1098 = vpack.c.b16 %v1083, %v1082
  %v1099 = vpack.c.b16 %v1085, %v1084
  %v1100 = vpack.c.b16 %v1087, %v1086
  %v1101 = vpack.c.b16 %v1089, %v1088
  %v1102 = vpack.c.b16 %v1091, %v1090
  %v1103 = vpack.c.b16 %v1093, %v1092
  %v1104 = vpack.c.b16 %v1095, %v1094
  %v1105 = vpack.c.b16 %v1097, %v1096
  %1114 = vmatpush.bf16.msra.mxu0 %v1105
  %1115 = vmatpush.bf16.msra.mxu0 %v1104
  %1116 = vmatpush.bf16.msra.mxu0 %v1103
  %1117 = vmatpush.bf16.msra.mxu0 %v1102
  %1118 = vmatpush.bf16.msra.mxu0 %v1101
  %1119 = vmatpush.bf16.msra.mxu0 %v1100
  %1120 = vmatpush.bf16.msra.mxu0 %v1099
  %1121 = vmatpush.bf16.msra.mxu0 %v1098
  %1122 = vmatmul.bf16.gmra.mxu0 %v1062
  %v1123 = vpop.f32.mrf.mxu0
  %v1124 = vadd.f32 0.0, %v1123
  %v1125 = vpop.f32.mrf.mxu0
  %v1126 = vadd.f32 0.0, %v1125
  %1127 = vmatmul.bf16.gmra.mxu0 %v1063
  %v1128 = vpop.f32.mrf.mxu0
  %v1129 = vadd.f32 0.0, %v1128
  %v1130 = vpop.f32.mrf.mxu0
  %v1131 = vadd.f32 0.0, %v1130
  %1132 = vdwg.mxu0
  %v1133 = vadd.f32 %v1009, %v1124
  %v1134 = vadd.f32 %v1011, %v1126
  %v1135 = vadd.f32 %v1014, %v1129
  %v1136 = vadd.f32 %v1016, %v1131
  %v1137 = vld [vmem:[%s7] sm:$0x1]
  %v1138 = vld [vmem:[%s8] sm:$0x1]
  %v1139 = vadd.f32 %v1133, %v1134
  %v1140 = vadd.f32 %v1139, %v1135
  %v1141 = vadd.f32 %v1140, %v1136
  %v1142 = vrot.slane %v1141, 4
  %v1143 = vadd.f32 %v1141, %v1142
  %v1144 = vrot.slane %v1143, 2
  %v1145 = vadd.f32 %v1143, %v1144
  %v1146 = vrot.slane %v1145, 1
  %v1147 = vadd.f32 %v1145, %v1146
  %1148 = vrot.lane.b32.xlu0 %v1147, 64
  %v1149 = vpop.permute.xlu0 %1148
  %v1150 = vadd.f32 %v1147, %v1149
  %1151 = vrot.lane.b32.xlu0 %v1150, 32
  %v1152 = vpop.permute.xlu0 %1151
  %v1153 = vadd.f32 %v1150, %v1152
  %1154 = vrot.lane.b32.xlu0 %v1153, 16
  %v1155 = vpop.permute.xlu0 %1154
  %v1156 = vadd.f32 %v1153, %v1155
  %1157 = vrot.lane.b32.xlu0 %v1156, 8
  %v1158 = vpop.permute.xlu0 %1157
  %v1159 = vadd.f32 %v1156, %v1158
  %v1160 = vmul.f32 %v1133, %v1133
  %v1161 = vmul.f32 %v1134, %v1134
  %v1162 = vmul.f32 %v1135, %v1135
  %v1163 = vmul.f32 %v1136, %v1136
  %v1164 = vadd.f32 %v1160, %v1161
  %v1165 = vadd.f32 %v1164, %v1162
  %v1166 = vadd.f32 %v1165, %v1163
  %v1167 = vrot.slane %v1166, 4
  %v1168 = vadd.f32 %v1166, %v1167
  %v1169 = vrot.slane %v1168, 2
  %v1170 = vadd.f32 %v1168, %v1169
  %v1171 = vrot.slane %v1170, 1
  %v1172 = vadd.f32 %v1170, %v1171
  %1173 = vrot.lane.b32.xlu0 %v1172, 64
  %v1174 = vpop.permute.xlu0 %1173
  %v1175 = vadd.f32 %v1172, %v1174
  %1176 = vrot.lane.b32.xlu0 %v1175, 32
  %v1177 = vpop.permute.xlu0 %1176
  %v1178 = vadd.f32 %v1175, %v1177
  %1179 = vrot.lane.b32.xlu0 %v1178, 16
  %v1180 = vpop.permute.xlu0 %1179
  %v1181 = vadd.f32 %v1178, %v1180
  %1182 = vrot.lane.b32.xlu0 %v1181, 8
  %v1183 = vpop.permute.xlu0 %1182
  %v1184 = vadd.f32 %v1181, %v1183
  %v1185 = vmul.f32 %v1159, 0.001953125
  %v1186 = vmul.f32 %v1184, 0.001953125
  %v1187 = vmul.f32 %v1185, %v1185
  %v1188 = vsub.f32 %v1186, %v1187
  %v1189 = vadd.f32 %v1188, 1e-05
  %v1190 = vrsqrt.pop %v1189
  %v1191 = vmul.f32 %v1190, %v1189
  %v1192 = vmul.f32 %v1191, %v1190
  %v1193 = vmul.f32 0.5, %v1192
  %v1194 = vsub.f32 1.5, %v1193
  %v1195 = vmul.f32 %v1190, %v1194
  %vm1196 = vweird.f32 %v1189
  %vm1197 = vweird.f32 %v1190
  %vm1198 = vmor %vm1196, %vm1197
  %v1199 = vsel %vm1198, %v1190, %v1195
  %v1200 = vmul.f32 %v1137, %v1199
  %v1201 = vmul.f32 %v1185, %v1200
  %v1202 = vsub.f32 %v1138, %v1201
  %v1204 = vperm.slane %v1200, 0
  %v1206 = vmul.f32 %v1133, %v1204
  %v1207 = vmul.f32 %v1134, %v1204
  %v1208 = vmul.f32 %v1135, %v1204
  %v1209 = vmul.f32 %v1136, %v1204
  %v1211 = vperm.slane %v1202, 0
  %v1213 = vadd.f32 %v1206, %v1211
  %v1214 = vadd.f32 %v1207, %v1211
  %v1215 = vadd.f32 %v1208, %v1211
  %v1216 = vadd.f32 %v1209, %v1211
  %v1217 = vmax.f32 %v1213, 0.0
  %v1218 = vmax.f32 %v1214, 0.0
  %v1219 = vmax.f32 %v1215, 0.0
  %v1220 = vmax.f32 %v1216, 0.0
  %v1221 = vpack.c.bf16 %v1218, %v1217
  %v1222 = vpack.c.bf16 %v1220, %v1219
  %v1223 = vld [vmem:[%s9] sm:$0xff]
  %v1224 = vld [vmem:[%s9 + $0x8] sm:$0xff]
  %v1225 = vld [vmem:[%s9 + $0x10] sm:$0xff]
  %v1226 = vld [vmem:[%s9 + $0x18] sm:$0xff]
  %v1227 = vld [vmem:[%s9 + $0x20] sm:$0xff]
  %v1228 = vld [vmem:[%s9 + $0x28] sm:$0xff]
  %v1229 = vld [vmem:[%s9 + $0x30] sm:$0xff]
  %v1230 = vld [vmem:[%s9 + $0x38] sm:$0xff]
  %v1231 = vld [vmem:[%s9 + $0x40] sm:$0xff]
  %v1232 = vld [vmem:[%s9 + $0x48] sm:$0xff]
  %v1233 = vld [vmem:[%s9 + $0x50] sm:$0xff]
  %v1234 = vld [vmem:[%s9 + $0x58] sm:$0xff]
  %v1235 = vld [vmem:[%s9 + $0x60] sm:$0xff]
  %v1236 = vld [vmem:[%s9 + $0x68] sm:$0xff]
  %v1237 = vld [vmem:[%s9 + $0x70] sm:$0xff]
  %v1238 = vld [vmem:[%s9 + $0x78] sm:$0xff]
  %v1239 = vld [vmem:[%s9 + $0x80] sm:$0xff]
  %v1240 = vld [vmem:[%s9 + $0x88] sm:$0xff]
  %v1241 = vld [vmem:[%s9 + $0x90] sm:$0xff]
  %v1242 = vld [vmem:[%s9 + $0x98] sm:$0xff]
  %v1243 = vld [vmem:[%s9 + $0xa0] sm:$0xff]
  %v1244 = vld [vmem:[%s9 + $0xa8] sm:$0xff]
  %v1245 = vld [vmem:[%s9 + $0xb0] sm:$0xff]
  %v1246 = vld [vmem:[%s9 + $0xb8] sm:$0xff]
  %v1247 = vld [vmem:[%s9 + $0xc0] sm:$0xff]
  %v1248 = vld [vmem:[%s9 + $0xc8] sm:$0xff]
  %v1249 = vld [vmem:[%s9 + $0xd0] sm:$0xff]
  %v1250 = vld [vmem:[%s9 + $0xd8] sm:$0xff]
  %v1251 = vld [vmem:[%s9 + $0xe0] sm:$0xff]
  %v1252 = vld [vmem:[%s9 + $0xe8] sm:$0xff]
  %v1253 = vld [vmem:[%s9 + $0xf0] sm:$0xff]
  %v1254 = vld [vmem:[%s9 + $0xf8] sm:$0xff]
  %v1287 = vunpack.c.l.b16 %v1223
  %v1288 = vunpack.c.h.b16 %v1223
  %v1289 = vunpack.c.l.b16 %v1224
  %v1290 = vunpack.c.h.b16 %v1224
  %v1291 = vunpack.c.l.b16 %v1225
  %v1292 = vunpack.c.h.b16 %v1225
  %v1293 = vunpack.c.l.b16 %v1226
  %v1294 = vunpack.c.h.b16 %v1226
  %v1295 = vunpack.c.l.b16 %v1227
  %v1296 = vunpack.c.h.b16 %v1227
  %v1297 = vunpack.c.l.b16 %v1228
  %v1298 = vunpack.c.h.b16 %v1228
  %v1299 = vunpack.c.l.b16 %v1229
  %v1300 = vunpack.c.h.b16 %v1229
  %v1301 = vunpack.c.l.b16 %v1230
  %v1302 = vunpack.c.h.b16 %v1230
  %v1303 = vunpack.c.l.b16 %v1231
  %v1304 = vunpack.c.h.b16 %v1231
  %v1305 = vunpack.c.l.b16 %v1232
  %v1306 = vunpack.c.h.b16 %v1232
  %v1307 = vunpack.c.l.b16 %v1233
  %v1308 = vunpack.c.h.b16 %v1233
  %v1309 = vunpack.c.l.b16 %v1234
  %v1310 = vunpack.c.h.b16 %v1234
  %v1311 = vunpack.c.l.b16 %v1235
  %v1312 = vunpack.c.h.b16 %v1235
  %v1313 = vunpack.c.l.b16 %v1236
  %v1314 = vunpack.c.h.b16 %v1236
  %v1315 = vunpack.c.l.b16 %v1237
  %v1316 = vunpack.c.h.b16 %v1237
  %v1317 = vunpack.c.l.b16 %v1238
  %v1318 = vunpack.c.h.b16 %v1238
  %v1319 = vunpack.c.l.b16 %v1239
  %v1320 = vunpack.c.h.b16 %v1239
  %v1321 = vunpack.c.l.b16 %v1240
  %v1322 = vunpack.c.h.b16 %v1240
  %v1323 = vunpack.c.l.b16 %v1241
  %v1324 = vunpack.c.h.b16 %v1241
  %v1325 = vunpack.c.l.b16 %v1242
  %v1326 = vunpack.c.h.b16 %v1242
  %v1327 = vunpack.c.l.b16 %v1243
  %v1328 = vunpack.c.h.b16 %v1243
  %v1329 = vunpack.c.l.b16 %v1244
  %v1330 = vunpack.c.h.b16 %v1244
  %v1331 = vunpack.c.l.b16 %v1245
  %v1332 = vunpack.c.h.b16 %v1245
  %v1333 = vunpack.c.l.b16 %v1246
  %v1334 = vunpack.c.h.b16 %v1246
  %v1335 = vunpack.c.l.b16 %v1247
  %v1336 = vunpack.c.h.b16 %v1247
  %v1337 = vunpack.c.l.b16 %v1248
  %v1338 = vunpack.c.h.b16 %v1248
  %v1339 = vunpack.c.l.b16 %v1249
  %v1340 = vunpack.c.h.b16 %v1249
  %v1341 = vunpack.c.l.b16 %v1250
  %v1342 = vunpack.c.h.b16 %v1250
  %v1343 = vunpack.c.l.b16 %v1251
  %v1344 = vunpack.c.h.b16 %v1251
  %v1345 = vunpack.c.l.b16 %v1252
  %v1346 = vunpack.c.h.b16 %v1252
  %v1347 = vunpack.c.l.b16 %v1253
  %v1348 = vunpack.c.h.b16 %v1253
  %v1349 = vunpack.c.l.b16 %v1254
  %v1350 = vunpack.c.h.b16 %v1254
  %v1351 = vpack.c.b16 %v1291, %v1287
  %v1352 = vpack.c.b16 %v1292, %v1288
  %v1353 = vpack.c.b16 %v1293, %v1289
  %v1354 = vpack.c.b16 %v1294, %v1290
  %v1355 = vpack.c.b16 %v1299, %v1295
  %v1356 = vpack.c.b16 %v1300, %v1296
  %v1357 = vpack.c.b16 %v1301, %v1297
  %v1358 = vpack.c.b16 %v1302, %v1298
  %v1359 = vpack.c.b16 %v1307, %v1303
  %v1360 = vpack.c.b16 %v1308, %v1304
  %v1361 = vpack.c.b16 %v1309, %v1305
  %v1362 = vpack.c.b16 %v1310, %v1306
  %v1363 = vpack.c.b16 %v1315, %v1311
  %v1364 = vpack.c.b16 %v1316, %v1312
  %v1365 = vpack.c.b16 %v1317, %v1313
  %v1366 = vpack.c.b16 %v1318, %v1314
  %v1367 = vpack.c.b16 %v1323, %v1319
  %v1368 = vpack.c.b16 %v1324, %v1320
  %v1369 = vpack.c.b16 %v1325, %v1321
  %v1370 = vpack.c.b16 %v1326, %v1322
  %v1371 = vpack.c.b16 %v1331, %v1327
  %v1372 = vpack.c.b16 %v1332, %v1328
  %v1373 = vpack.c.b16 %v1333, %v1329
  %v1374 = vpack.c.b16 %v1334, %v1330
  %v1375 = vpack.c.b16 %v1339, %v1335
  %v1376 = vpack.c.b16 %v1340, %v1336
  %v1377 = vpack.c.b16 %v1341, %v1337
  %v1378 = vpack.c.b16 %v1342, %v1338
  %v1379 = vpack.c.b16 %v1347, %v1343
  %v1380 = vpack.c.b16 %v1348, %v1344
  %v1381 = vpack.c.b16 %v1349, %v1345
  %v1382 = vpack.c.b16 %v1350, %v1346
  %1415 = vmatpush.bf16.msra.mxu0 %v1379
  %1416 = vmatpush.bf16.msra.mxu0 %v1375
  %1417 = vmatpush.bf16.msra.mxu0 %v1371
  %1418 = vmatpush.bf16.msra.mxu0 %v1367
  %1419 = vmatpush.bf16.msra.mxu0 %v1363
  %1420 = vmatpush.bf16.msra.mxu0 %v1359
  %1421 = vmatpush.bf16.msra.mxu0 %v1355
  %1422 = vmatpush.bf16.msra.mxu0 %v1351
  %1423 = vmatmul.bf16.gmra.mxu0 %v1221
  %v1424 = vpop.f32.mrf.mxu0
  %v1425 = vadd.f32 %v36, %v1424
  %v1426 = vpop.f32.mrf.mxu0
  %v1427 = vadd.f32 %v40, %v1426
  %1428 = vmatmul.bf16.gmra.mxu0 %v1222
  %v1429 = vpop.f32.mrf.mxu0
  %v1430 = vadd.f32 %v44, %v1429
  %v1431 = vpop.f32.mrf.mxu0
  %v1432 = vadd.f32 %v48, %v1431
  %1433 = vdwg.mxu0
  %1434 = vmatpush.bf16.msra.mxu0 %v1380
  %1435 = vmatpush.bf16.msra.mxu0 %v1376
  %1436 = vmatpush.bf16.msra.mxu0 %v1372
  %1437 = vmatpush.bf16.msra.mxu0 %v1368
  %1438 = vmatpush.bf16.msra.mxu0 %v1364
  %1439 = vmatpush.bf16.msra.mxu0 %v1360
  %1440 = vmatpush.bf16.msra.mxu0 %v1356
  %1441 = vmatpush.bf16.msra.mxu0 %v1352
  %1442 = vmatmul.bf16.gmra.mxu0 %v1221
  %v1443 = vpop.f32.mrf.mxu0
  %v1444 = vadd.f32 %v37, %v1443
  %v1445 = vpop.f32.mrf.mxu0
  %v1446 = vadd.f32 %v41, %v1445
  %1447 = vmatmul.bf16.gmra.mxu0 %v1222
  %v1448 = vpop.f32.mrf.mxu0
  %v1449 = vadd.f32 %v45, %v1448
  %v1450 = vpop.f32.mrf.mxu0
  %v1451 = vadd.f32 %v49, %v1450
  %1452 = vdwg.mxu0
  %1453 = vmatpush.bf16.msra.mxu0 %v1381
  %1454 = vmatpush.bf16.msra.mxu0 %v1377
  %1455 = vmatpush.bf16.msra.mxu0 %v1373
  %1456 = vmatpush.bf16.msra.mxu0 %v1369
  %1457 = vmatpush.bf16.msra.mxu0 %v1365
  %1458 = vmatpush.bf16.msra.mxu0 %v1361
  %1459 = vmatpush.bf16.msra.mxu0 %v1357
  %1460 = vmatpush.bf16.msra.mxu0 %v1353
  %1461 = vmatmul.bf16.gmra.mxu0 %v1221
  %v1462 = vpop.f32.mrf.mxu0
  %v1463 = vadd.f32 %v38, %v1462
  %v1464 = vpop.f32.mrf.mxu0
  %v1465 = vadd.f32 %v42, %v1464
  %1466 = vmatmul.bf16.gmra.mxu0 %v1222
  %v1467 = vpop.f32.mrf.mxu0
  %v1468 = vadd.f32 %v46, %v1467
  %v1469 = vpop.f32.mrf.mxu0
  %v1470 = vadd.f32 %v50, %v1469
  %1471 = vdwg.mxu0
  %1472 = vmatpush.bf16.msra.mxu0 %v1382
  %1473 = vmatpush.bf16.msra.mxu0 %v1378
  %1474 = vmatpush.bf16.msra.mxu0 %v1374
  %1475 = vmatpush.bf16.msra.mxu0 %v1370
  %1476 = vmatpush.bf16.msra.mxu0 %v1366
  %1477 = vmatpush.bf16.msra.mxu0 %v1362
  %1478 = vmatpush.bf16.msra.mxu0 %v1358
  %1479 = vmatpush.bf16.msra.mxu0 %v1354
  %1480 = vmatmul.bf16.gmra.mxu0 %v1221
  %v1481 = vpop.f32.mrf.mxu0
  %v1482 = vadd.f32 %v39, %v1481
  %v1483 = vpop.f32.mrf.mxu0
  %v1484 = vadd.f32 %v43, %v1483
  %1485 = vmatmul.bf16.gmra.mxu0 %v1222
  %v1486 = vpop.f32.mrf.mxu0
  %v1487 = vadd.f32 %v47, %v1486
  %v1488 = vpop.f32.mrf.mxu0
  %v1489 = vadd.f32 %v51, %v1488
  %1490 = vdwg.mxu0
  %1491 = vst [vmem:[%s10] sm:$0xff] %v1425
  %1492 = vst [vmem:[%s10 + $0x8] sm:$0xff] %v1444
  %1493 = vst [vmem:[%s10 + $0x10] sm:$0xff] %v1463
  %1494 = vst [vmem:[%s10 + $0x18] sm:$0xff] %v1482
  %1495 = vst [vmem:[%s10 + $0x20] sm:$0xff] %v1427
  %1496 = vst [vmem:[%s10 + $0x28] sm:$0xff] %v1446
  %1497 = vst [vmem:[%s10 + $0x30] sm:$0xff] %v1465
  %1498 = vst [vmem:[%s10 + $0x38] sm:$0xff] %v1484
  %1499 = vst [vmem:[%s10 + $0x40] sm:$0xff] %v1430
  %1500 = vst [vmem:[%s10 + $0x48] sm:$0xff] %v1449
  %1501 = vst [vmem:[%s10 + $0x50] sm:$0xff] %v1468
  %1502 = vst [vmem:[%s10 + $0x58] sm:$0xff] %v1487
  %1503 = vst [vmem:[%s10 + $0x60] sm:$0xff] %v1432
  %1504 = vst [vmem:[%s10 + $0x68] sm:$0xff] %v1451
  %1505 = vst [vmem:[%s10 + $0x70] sm:$0xff] %v1470
  %1506 = vst [vmem:[%s10 + $0x78] sm:$0xff] %v1489
  // Predicated region
  $region42: #{bottleneck_v2_nhwc.1} parent=0 // pred_check
    _
  $region43: #{bottleneck_v2_nhwc.1} parent=0 // pred_check_branch
    %1508 = sbr.rel (0) target = $region45
  $region44: #{bottleneck_v2_nhwc.1} parent=0 // pred_region
    _
  $region45: #{bottleneck_v2_nhwc.1} parent=0 // pred_fallthru
    _
  // Predicated region
  $region46: #{bottleneck_v2_nhwc.1} parent=0 // pred_check
    _
  $region47: #{bottleneck_v2_nhwc.1} parent=0 // pred_check_branch
    %1510 = sbr.rel (0) target = $region49
  $region48: #{bottleneck_v2_nhwc.1} parent=0 // pred_region
    _
  $region49: #{bottleneck_v2_nhwc.1} parent=0 // pred_fallthru
    _

</llo_original>
